<compile_context>
chip_gen: v5e
topology: v5e:2x2
jax: 0.10.0
libtpu: 0.0.40
codegen_flags: <defaults>
</compile_context>

<pallas_src>
import functools

import jax
import jax.numpy as jnp
from jax.experimental import pallas as pl
from jax.experimental.pallas import tpu as pltpu

LN_EPS = 1e-5
NEG_SLOPE = 0.2   # LeakyReLU slope for the DGCNN branch
SUB = 16          # bf16 sublane packing -> batch tiles are multiples of 16


def _round_up(x, m):
    return ((x + m - 1) // m) * m


def _inv_l2(xf):
    # torch.div(x, torch.norm(x, 2, dim=1, keepdim=True)); zero rows (from batch
    # padding) are masked to 0 instead of producing Inf/NaN.
    ss = jnp.sum(xf * xf, axis=-1, keepdims=True)
    return jnp.where(ss > 0.0, jax.lax.rsqrt(ss), 0.0)


def _layernorm(h, gamma, beta):
    # Single-pass mean / E[x^2]; clamp variance (f32 cancellation can go <0).
    mu = jnp.mean(h, axis=-1, keepdims=True)
    ex2 = jnp.mean(h * h, axis=-1, keepdims=True)
    var = jnp.maximum(ex2 - mu * mu, 0.0)
    return (h - mu) * jax.lax.rsqrt(var + LN_EPS) * gamma + beta


def _leaky_relu(h):
    return jnp.maximum(h, NEG_SLOPE * h)


def classifier_kernel(x_ref,
                      w1_ref, b1_ref, g1_ref, be1_ref,
                      w2_ref, b2_ref, g2_ref, be2_ref,
                      w3_ref, b3_ref,
                      o_ref):
    x = x_ref[...]                               # bf16 (TB, F)
    xf = x.astype(jnp.float32)

    # --- mlp1: l2_norm -> Linear(F,512) -> LayerNorm(512) -> LeakyReLU ---
    inv = _inv_l2(xf)                            # (TB, 1) f32
    h = jnp.dot(x, w1_ref[...],
                preferred_element_type=jnp.float32) * inv + b1_ref[...]
    h = _leaky_relu(_layernorm(h, g1_ref[...], be1_ref[...]))
    # dp1: Dropout -> identity (eval mode)

    # --- mlp2: l2_norm -> Linear(512,256) -> LayerNorm(256) -> LeakyReLU ---
    inv = _inv_l2(h)
    h = jnp.dot(h.astype(jnp.bfloat16), w2_ref[...],
                preferred_element_type=jnp.float32) * inv + b2_ref[...]
    h = _leaky_relu(_layernorm(h, g2_ref[...], be2_ref[...]))
    # dp2: Dropout -> identity (eval mode)

    # --- mlp3: Linear(256, num_class_padded) ---
    o_ref[...] = (jnp.dot(h.astype(jnp.bfloat16), w3_ref[...],
                          preferred_element_type=jnp.float32) + b3_ref[...])


def class_classifier_forward(x, params, *, num_class, block_b=512):
    """x: [B, input_dim] float32. params: dict of weights (see init_params)."""
    B, F = x.shape
    NC_pad = params["w3"].shape[1]

    # Batch tile: multiple of 16 (bf16 sublane packing), capped at block_b.
    TB = _round_up(min(block_b, _round_up(B, SUB)), SUB)
    # Guarantee >= 2 grid steps when possible so v7x's two TensorCores both run.
    if _round_up(B, TB) // TB < 2 and TB > SUB:
        TB = max(SUB, _round_up(TB // 2, SUB))
    Bp = _round_up(B, TB)

    if Bp != B:
        x = jnp.pad(x, ((0, Bp - B), (0, 0)))
    x = x.astype(jnp.bfloat16)                   # halve the dominant HBM stream
    grid = (Bp // TB,)

    def _const(shape):
        return pl.BlockSpec(shape, lambda i: (0, 0))

    in_specs = [
        pl.BlockSpec((TB, F), lambda i: (i, 0)),          # x tile
        _const(params["w1"].shape), _const(params["b1"].shape),
        _const(params["g1"].shape), _const(params["be1"].shape),
        _const(params["w2"].shape), _const(params["b2"].shape),
        _const(params["g2"].shape), _const(params["be2"].shape),
        _const(params["w3"].shape), _const(params["b3"].shape),
    ]
    out_specs = pl.BlockSpec((TB, NC_pad), lambda i: (i, 0))

    # VMEM budget: double-buffered x/out tiles + (conservatively 2x) resident
    # weights + LN/bias params + intermediate headroom.
    weight_bytes = 2 * 2 * (F * 512 + 512 * 256 + 256 * NC_pad)     # bf16
    param_bytes = 2 * 4 * (3 * 512 + 3 * 256 + NC_pad)              # f32
    io_bytes = 2 * TB * F * 2 + 2 * TB * NC_pad * 4
    act_bytes = 8 * TB * 512 * 4
    vmem_limit = int(min(100 * 1024 * 1024,
                         max(32 * 1024 * 1024,
                             weight_bytes + param_bytes + io_bytes + act_bytes
                             + (4 << 20))))

    flops = 2 * Bp * (F * 512 + 512 * 256 + 256 * NC_pad)
    bytes_accessed = (Bp * F * 2 + Bp * NC_pad * 4
                      + weight_bytes // 2 + param_bytes // 2)
    cost = pl.CostEstimate(flops=flops, transcendentals=4 * Bp,
                           bytes_accessed=bytes_accessed)

    out = pl.pallas_call(
        classifier_kernel,
        out_shape=jax.ShapeDtypeStruct((Bp, NC_pad), jnp.float32),
        grid=grid,
        in_specs=in_specs,
        out_specs=out_specs,
        compiler_params=pltpu.CompilerParams(
            dimension_semantics=("parallel",),
            vmem_limit_bytes=vmem_limit),
        cost_estimate=cost,
    )(x,
      params["w1"], params["b1"], params["g1"], params["be1"],
      params["w2"], params["b2"], params["g2"], params["be2"],
      params["w3"], params["b3"])

    return out[:B, :num_class]


def init_params(key, input_dim, num_class=10):
    """Deterministic synthetic init. Weights stored transposed [in, out] in bf16;
    biases / LayerNorm params in f32. W3/b3 zero-padded to a 128-wide class dim."""
    ks = jax.random.split(key, 3)
    nc_pad = _round_up(num_class, 128)

    def lin(k, fan_in, fan_out):
        bound = 1.0 / float(jnp.sqrt(fan_in))
        kw, kb = jax.random.split(k)
        w = jax.random.uniform(kw, (fan_in, fan_out), jnp.float32, -bound, bound)
        b = jax.random.uniform(kb, (1, fan_out), jnp.float32, -bound, bound)
        return w, b

    w1, b1 = lin(ks[0], input_dim, 512)
    w2, b2 = lin(ks[1], 512, 256)
    w3, b3 = lin(ks[2], 256, num_class)
    w3 = jnp.pad(w3, ((0, 0), (0, nc_pad - num_class)))
    b3 = jnp.pad(b3, ((0, 0), (0, nc_pad - num_class)))

    return dict(
        w1=w1.astype(jnp.bfloat16), b1=b1,
        g1=jnp.ones((1, 512), jnp.float32), be1=jnp.zeros((1, 512), jnp.float32),
        w2=w2.astype(jnp.bfloat16), b2=b2,
        g2=jnp.ones((1, 256), jnp.float32), be2=jnp.zeros((1, 256), jnp.float32),
        w3=w3.astype(jnp.bfloat16), b3=b3,
    )


def reference_forward(x, params, num_class):
    """Pure-JAX f32 reference (weights upcast from bf16)."""
    def l2n(v):
        return v / jnp.sqrt(jnp.sum(v * v, axis=-1, keepdims=True))

    def ln(v, g, b):
        mu = jnp.mean(v, -1, keepdims=True)
        var = jnp.mean((v - mu) ** 2, -1, keepdims=True)
        return (v - mu) / jnp.sqrt(var + LN_EPS) * g + b

    def lrelu(v):
        return jnp.where(v > 0, v, NEG_SLOPE * v)

    w1 = params["w1"].astype(jnp.float32)
    w2 = params["w2"].astype(jnp.float32)
    w3 = params["w3"].astype(jnp.float32)
    h = l2n(x)
    h = lrelu(ln(h @ w1 + params["b1"], params["g1"], params["be1"]))
    h = l2n(h)
    h = lrelu(ln(h @ w2 + params["b2"], params["g2"], params["be2"]))
    y = h @ w3 + params["b3"]
    return y[:, :num_class]


if __name__ == "__main__":
    B, INPUT_DIM, NUM_CLASS = 8, 256, 10
    key = jax.random.PRNGKey(0)
    kx, kp = jax.random.split(key)

    x = jax.random.normal(kx, (B, INPUT_DIM), jnp.float32)
    params = init_params(kp, INPUT_DIM, NUM_CLASS)

    fwd = functools.partial(class_classifier_forward, num_class=NUM_CLASS)
    out = fwd(x, params)
    jax.block_until_ready(out)

    assert out.shape == (B, NUM_CLASS) and out.dtype == jnp.float32
    assert bool(jnp.all(jnp.isfinite(out)))

    ref = reference_forward(x, params, NUM_CLASS)
    max_err = float(jnp.max(jnp.abs(out - ref)))
    assert max_err < 0.15, f"max abs diff vs f32 reference too large: {max_err}"

    print("KERNEL_OK")
</pallas_src>

<mosaic_0001>
module attributes {stable_mosaic.version = 11 : i64} {
  func.func @classifier_kernel(%arg0: i32, %arg1: memref<16x256xbf16, #tpu.memory_space<vmem>>, %arg2: memref<256x512xbf16, #tpu.memory_space<vmem>>, %arg3: memref<1x512xf32, #tpu.memory_space<vmem>>, %arg4: memref<1x512xf32, #tpu.memory_space<vmem>>, %arg5: memref<1x512xf32, #tpu.memory_space<vmem>>, %arg6: memref<512x256xbf16, #tpu.memory_space<vmem>>, %arg7: memref<1x256xf32, #tpu.memory_space<vmem>>, %arg8: memref<1x256xf32, #tpu.memory_space<vmem>>, %arg9: memref<1x256xf32, #tpu.memory_space<vmem>>, %arg10: memref<256x128xbf16, #tpu.memory_space<vmem>>, %arg11: memref<1x128xf32, #tpu.memory_space<vmem>>, %arg12: memref<16x128xf32, #tpu.memory_space<vmem>>) attributes {dimension_semantics = [#tpu.dimension_semantics<parallel>], iteration_bounds = array<i64: 1>, scalar_prefetch = 0 : i64, scratch_operands = 0 : i64, tpu.core_type = #tpu.core_type<tc>, window_params = [{transform_indices = @transform_0, window_bounds = array<i64: 16, 256>}, {pipeline_mode = #tpu.pipeline_mode<synchronous>, transform_indices = @transform_1, window_bounds = array<i64: 256, 512>}, {pipeline_mode = #tpu.pipeline_mode<synchronous>, transform_indices = @transform_2, window_bounds = array<i64: 1, 512>}, {pipeline_mode = #tpu.pipeline_mode<synchronous>, transform_indices = @transform_3, window_bounds = array<i64: 1, 512>}, {pipeline_mode = #tpu.pipeline_mode<synchronous>, transform_indices = @transform_4, window_bounds = array<i64: 1, 512>}, {pipeline_mode = #tpu.pipeline_mode<synchronous>, transform_indices = @transform_5, window_bounds = array<i64: 512, 256>}, {pipeline_mode = #tpu.pipeline_mode<synchronous>, transform_indices = @transform_6, window_bounds = array<i64: 1, 256>}, {pipeline_mode = #tpu.pipeline_mode<synchronous>, transform_indices = @transform_7, window_bounds = array<i64: 1, 256>}, {pipeline_mode = #tpu.pipeline_mode<synchronous>, transform_indices = @transform_8, window_bounds = array<i64: 1, 256>}, {pipeline_mode = #tpu.pipeline_mode<synchronous>, transform_indices = @transform_9, window_bounds = array<i64: 256, 128>}, {pipeline_mode = #tpu.pipeline_mode<synchronous>, transform_indices = @transform_10, window_bounds = array<i64: 1, 128>}, {transform_indices = @transform_11, window_bounds = array<i64: 16, 128>}]} {
    %c0 = arith.constant 0 : index
    %c0_0 = arith.constant 0 : index
    %0 = vector.load %arg1[%c0, %c0_0] : memref<16x256xbf16, #tpu.memory_space<vmem>>, vector<16x256xbf16>
    %1 = arith.extf %0 : vector<16x256xbf16> to vector<16x256xf32>
    %2 = arith.mulf %1, %1 : vector<16x256xf32>
    %cst = arith.constant dense<0.000000e+00> : vector<16xf32>
    %3 = vector.multi_reduction <add>, %2, %cst [1] : vector<16x256xf32> to vector<16xf32>
    %4 = vector.shape_cast %3 : vector<16xf32> to vector<16x1xf32>
    %cst_1 = arith.constant 0.000000e+00 : f32
    %5 = vector.broadcast %cst_1 : f32 to vector<16x1xf32>
    %6 = arith.cmpf ogt, %4, %5 : vector<16x1xf32>
    %7 = math.rsqrt %4 : vector<16x1xf32>
    %cst_2 = arith.constant 0.000000e+00 : f32
    %8 = vector.broadcast %cst_2 : f32 to vector<16x1xf32>
    %9 = arith.select %6, %7, %8 : vector<16x1xi1>, vector<16x1xf32>
    %c0_3 = arith.constant 0 : index
    %c0_4 = arith.constant 0 : index
    %10 = vector.load %arg2[%c0_3, %c0_4] : memref<256x512xbf16, #tpu.memory_space<vmem>>, vector<256x512xbf16>
    %cst_5 = arith.constant dense<0.000000e+00> : vector<16x512xf32>
    %11 = tpu.matmul %0, %10, %cst_5 {dimension_numbers = #tpu.dot_dimension_numbers<[1], [0], [0], [1], [0, 0, 1, 1], [], []>} : vector<16x256xbf16>, vector<256x512xbf16>, vector<16x512xf32> -> vector<16x512xf32>
    %12 = vector.broadcast %9 : vector<16x1xf32> to vector<16x512xf32>
    %13 = arith.mulf %11, %12 : vector<16x512xf32>
    %c0_6 = arith.constant 0 : index
    %c0_7 = arith.constant 0 : index
    %14 = vector.load %arg3[%c0_6, %c0_7] : memref<1x512xf32, #tpu.memory_space<vmem>>, vector<1x512xf32>
    %15 = vector.broadcast %14 : vector<1x512xf32> to vector<16x512xf32>
    %16 = arith.addf %13, %15 : vector<16x512xf32>
    %c0_8 = arith.constant 0 : index
    %c0_9 = arith.constant 0 : index
    %17 = vector.load %arg4[%c0_8, %c0_9] : memref<1x512xf32, #tpu.memory_space<vmem>>, vector<1x512xf32>
    %c0_10 = arith.constant 0 : index
    %c0_11 = arith.constant 0 : index
    %18 = vector.load %arg5[%c0_10, %c0_11] : memref<1x512xf32, #tpu.memory_space<vmem>>, vector<1x512xf32>
    %cst_12 = arith.constant dense<0.000000e+00> : vector<16xf32>
    %19 = vector.multi_reduction <add>, %16, %cst_12 [1] : vector<16x512xf32> to vector<16xf32>
    %20 = vector.shape_cast %19 : vector<16xf32> to vector<16x1xf32>
    %cst_13 = arith.constant 5.120000e+02 : f32
    %21 = vector.broadcast %cst_13 : f32 to vector<16x1xf32>
    %22 = arith.divf %20, %21 : vector<16x1xf32>
    %23 = arith.mulf %16, %16 : vector<16x512xf32>
    %cst_14 = arith.constant dense<0.000000e+00> : vector<16xf32>
    %24 = vector.multi_reduction <add>, %23, %cst_14 [1] : vector<16x512xf32> to vector<16xf32>
    %25 = vector.shape_cast %24 : vector<16xf32> to vector<16x1xf32>
    %cst_15 = arith.constant 5.120000e+02 : f32
    %26 = vector.broadcast %cst_15 : f32 to vector<16x1xf32>
    %27 = arith.divf %25, %26 : vector<16x1xf32>
    %28 = arith.mulf %22, %22 : vector<16x1xf32>
    %29 = arith.subf %27, %28 : vector<16x1xf32>
    %cst_16 = arith.constant 0.000000e+00 : f32
    %30 = vector.broadcast %cst_16 : f32 to vector<16x1xf32>
    %31 = arith.maximumf %29, %30 : vector<16x1xf32>
    %32 = vector.broadcast %22 : vector<16x1xf32> to vector<16x512xf32>
    %33 = arith.subf %16, %32 : vector<16x512xf32>
    %cst_17 = arith.constant 9.99999974E-6 : f32
    %34 = vector.broadcast %cst_17 : f32 to vector<16x1xf32>
    %35 = arith.addf %31, %34 : vector<16x1xf32>
    %36 = math.rsqrt %35 : vector<16x1xf32>
    %37 = vector.broadcast %36 : vector<16x1xf32> to vector<16x512xf32>
    %38 = arith.mulf %33, %37 : vector<16x512xf32>
    %39 = vector.broadcast %17 : vector<1x512xf32> to vector<16x512xf32>
    %40 = arith.mulf %38, %39 : vector<16x512xf32>
    %41 = vector.broadcast %18 : vector<1x512xf32> to vector<16x512xf32>
    %42 = arith.addf %40, %41 : vector<16x512xf32>
    %cst_18 = arith.constant 2.000000e-01 : f32
    %43 = vector.broadcast %cst_18 : f32 to vector<16x512xf32>
    %44 = arith.mulf %43, %42 : vector<16x512xf32>
    %45 = arith.maximumf %42, %44 : vector<16x512xf32>
    %46 = arith.mulf %45, %45 : vector<16x512xf32>
    %cst_19 = arith.constant dense<0.000000e+00> : vector<16xf32>
    %47 = vector.multi_reduction <add>, %46, %cst_19 [1] : vector<16x512xf32> to vector<16xf32>
    %48 = vector.shape_cast %47 : vector<16xf32> to vector<16x1xf32>
    %cst_20 = arith.constant 0.000000e+00 : f32
    %49 = vector.broadcast %cst_20 : f32 to vector<16x1xf32>
    %50 = arith.cmpf ogt, %48, %49 : vector<16x1xf32>
    %51 = math.rsqrt %48 : vector<16x1xf32>
    %cst_21 = arith.constant 0.000000e+00 : f32
    %52 = vector.broadcast %cst_21 : f32 to vector<16x1xf32>
    %53 = arith.select %50, %51, %52 : vector<16x1xi1>, vector<16x1xf32>
    %54 = arith.truncf %45 : vector<16x512xf32> to vector<16x512xbf16>
    %c0_22 = arith.constant 0 : index
    %c0_23 = arith.constant 0 : index
    %55 = vector.load %arg6[%c0_22, %c0_23] : memref<512x256xbf16, #tpu.memory_space<vmem>>, vector<512x256xbf16>
    %cst_24 = arith.constant dense<0.000000e+00> : vector<16x256xf32>
    %56 = tpu.matmul %54, %55, %cst_24 {dimension_numbers = #tpu.dot_dimension_numbers<[1], [0], [0], [1], [0, 0, 1, 1], [], []>} : vector<16x512xbf16>, vector<512x256xbf16>, vector<16x256xf32> -> vector<16x256xf32>
    %57 = vector.broadcast %53 : vector<16x1xf32> to vector<16x256xf32>
    %58 = arith.mulf %56, %57 : vector<16x256xf32>
    %c0_25 = arith.constant 0 : index
    %c0_26 = arith.constant 0 : index
    %59 = vector.load %arg7[%c0_25, %c0_26] : memref<1x256xf32, #tpu.memory_space<vmem>>, vector<1x256xf32>
    %60 = vector.broadcast %59 : vector<1x256xf32> to vector<16x256xf32>
    %61 = arith.addf %58, %60 : vector<16x256xf32>
    %c0_27 = arith.constant 0 : index
    %c0_28 = arith.constant 0 : index
    %62 = vector.load %arg8[%c0_27, %c0_28] : memref<1x256xf32, #tpu.memory_space<vmem>>, vector<1x256xf32>
    %c0_29 = arith.constant 0 : index
    %c0_30 = arith.constant 0 : index
    %63 = vector.load %arg9[%c0_29, %c0_30] : memref<1x256xf32, #tpu.memory_space<vmem>>, vector<1x256xf32>
    %cst_31 = arith.constant dense<0.000000e+00> : vector<16xf32>
    %64 = vector.multi_reduction <add>, %61, %cst_31 [1] : vector<16x256xf32> to vector<16xf32>
    %65 = vector.shape_cast %64 : vector<16xf32> to vector<16x1xf32>
    %cst_32 = arith.constant 2.560000e+02 : f32
    %66 = vector.broadcast %cst_32 : f32 to vector<16x1xf32>
    %67 = arith.divf %65, %66 : vector<16x1xf32>
    %68 = arith.mulf %61, %61 : vector<16x256xf32>
    %cst_33 = arith.constant dense<0.000000e+00> : vector<16xf32>
    %69 = vector.multi_reduction <add>, %68, %cst_33 [1] : vector<16x256xf32> to vector<16xf32>
    %70 = vector.shape_cast %69 : vector<16xf32> to vector<16x1xf32>
    %cst_34 = arith.constant 2.560000e+02 : f32
    %71 = vector.broadcast %cst_34 : f32 to vector<16x1xf32>
    %72 = arith.divf %70, %71 : vector<16x1xf32>
    %73 = arith.mulf %67, %67 : vector<16x1xf32>
    %74 = arith.subf %72, %73 : vector<16x1xf32>
    %cst_35 = arith.constant 0.000000e+00 : f32
    %75 = vector.broadcast %cst_35 : f32 to vector<16x1xf32>
    %76 = arith.maximumf %74, %75 : vector<16x1xf32>
    %77 = vector.broadcast %67 : vector<16x1xf32> to vector<16x256xf32>
    %78 = arith.subf %61, %77 : vector<16x256xf32>
    %cst_36 = arith.constant 9.99999974E-6 : f32
    %79 = vector.broadcast %cst_36 : f32 to vector<16x1xf32>
    %80 = arith.addf %76, %79 : vector<16x1xf32>
    %81 = math.rsqrt %80 : vector<16x1xf32>
    %82 = vector.broadcast %81 : vector<16x1xf32> to vector<16x256xf32>
    %83 = arith.mulf %78, %82 : vector<16x256xf32>
    %84 = vector.broadcast %62 : vector<1x256xf32> to vector<16x256xf32>
    %85 = arith.mulf %83, %84 : vector<16x256xf32>
    %86 = vector.broadcast %63 : vector<1x256xf32> to vector<16x256xf32>
    %87 = arith.addf %85, %86 : vector<16x256xf32>
    %cst_37 = arith.constant 2.000000e-01 : f32
    %88 = vector.broadcast %cst_37 : f32 to vector<16x256xf32>
    %89 = arith.mulf %88, %87 : vector<16x256xf32>
    %90 = arith.maximumf %87, %89 : vector<16x256xf32>
    %91 = arith.truncf %90 : vector<16x256xf32> to vector<16x256xbf16>
    %c0_38 = arith.constant 0 : index
    %c0_39 = arith.constant 0 : index
    %92 = vector.load %arg10[%c0_38, %c0_39] : memref<256x128xbf16, #tpu.memory_space<vmem>>, vector<256x128xbf16>
    %cst_40 = arith.constant dense<0.000000e+00> : vector<16x128xf32>
    %93 = tpu.matmul %91, %92, %cst_40 {dimension_numbers = #tpu.dot_dimension_numbers<[1], [0], [0], [1], [0, 0, 1, 1], [], []>} : vector<16x256xbf16>, vector<256x128xbf16>, vector<16x128xf32> -> vector<16x128xf32>
    %c0_41 = arith.constant 0 : index
    %c0_42 = arith.constant 0 : index
    %94 = vector.load %arg11[%c0_41, %c0_42] : memref<1x128xf32, #tpu.memory_space<vmem>>, vector<1x128xf32>
    %95 = vector.broadcast %94 : vector<1x128xf32> to vector<16x128xf32>
    %96 = arith.addf %93, %95 : vector<16x128xf32>
    %c0_43 = arith.constant 0 : index
    %c0_44 = arith.constant 0 : index
    %97 = vector.load %arg12[%c0_43, %c0_44] : memref<16x128xf32, #tpu.memory_space<vmem>>, vector<16x128xf32>
    tpu.vector_store %arg12[%c0_43, %c0_44], %96 {strides = array<i32>} : memref<16x128xf32, #tpu.memory_space<vmem>>, vector<16x128xf32>,
    return
  }
  func.func @transform_0(%arg0: i32) -> (i32, i32) {
    %c0_i32 = arith.constant 0 : i32
    %c0_i32_0 = arith.constant 0 : i32
    return %arg0, %c0_i32 : i32, i32
  }
  func.func @transform_1(%arg0: i32) -> (i32, i32) {
    %c0_i32 = arith.constant 0 : i32
    %c0_i32_0 = arith.constant 0 : i32
    %c0_i32_1 = arith.constant 0 : i32
    return %c0_i32, %c0_i32_0 : i32, i32
  }
  func.func @transform_2(%arg0: i32) -> (i32, i32) {
    %c0_i32 = arith.constant 0 : i32
    %c0_i32_0 = arith.constant 0 : i32
    %c0_i32_1 = arith.constant 0 : i32
    return %c0_i32, %c0_i32_0 : i32, i32
  }
  func.func @transform_3(%arg0: i32) -> (i32, i32) {
    %c0_i32 = arith.constant 0 : i32
    %c0_i32_0 = arith.constant 0 : i32
    %c0_i32_1 = arith.constant 0 : i32
    return %c0_i32, %c0_i32_0 : i32, i32
  }
  func.func @transform_4(%arg0: i32) -> (i32, i32) {
    %c0_i32 = arith.constant 0 : i32
    %c0_i32_0 = arith.constant 0 : i32
    %c0_i32_1 = arith.constant 0 : i32
    return %c0_i32, %c0_i32_0 : i32, i32
  }
  func.func @transform_5(%arg0: i32) -> (i32, i32) {
    %c0_i32 = arith.constant 0 : i32
    %c0_i32_0 = arith.constant 0 : i32
    %c0_i32_1 = arith.constant 0 : i32
    return %c0_i32, %c0_i32_0 : i32, i32
  }
  func.func @transform_6(%arg0: i32) -> (i32, i32) {
    %c0_i32 = arith.constant 0 : i32
    %c0_i32_0 = arith.constant 0 : i32
    %c0_i32_1 = arith.constant 0 : i32
    return %c0_i32, %c0_i32_0 : i32, i32
  }
  func.func @transform_7(%arg0: i32) -> (i32, i32) {
    %c0_i32 = arith.constant 0 : i32
    %c0_i32_0 = arith.constant 0 : i32
    %c0_i32_1 = arith.constant 0 : i32
    return %c0_i32, %c0_i32_0 : i32, i32
  }
  func.func @transform_8(%arg0: i32) -> (i32, i32) {
    %c0_i32 = arith.constant 0 : i32
    %c0_i32_0 = arith.constant 0 : i32
    %c0_i32_1 = arith.constant 0 : i32
    return %c0_i32, %c0_i32_0 : i32, i32
  }
  func.func @transform_9(%arg0: i32) -> (i32, i32) {
    %c0_i32 = arith.constant 0 : i32
    %c0_i32_0 = arith.constant 0 : i32
    %c0_i32_1 = arith.constant 0 : i32
    return %c0_i32, %c0_i32_0 : i32, i32
  }
  func.func @transform_10(%arg0: i32) -> (i32, i32) {
    %c0_i32 = arith.constant 0 : i32
    %c0_i32_0 = arith.constant 0 : i32
    %c0_i32_1 = arith.constant 0 : i32
    return %c0_i32, %c0_i32_0 : i32, i32
  }
  func.func @transform_11(%arg0: i32) -> (i32, i32) {
    %c0_i32 = arith.constant 0 : i32
    %c0_i32_0 = arith.constant 0 : i32
    return %arg0, %c0_i32 : i32, i32
  }
}

</mosaic_0001>

<llo_original>
// kernel: tpu_custom_call.1
$region0: #{tpu_custom_call.1}
  #allocation0 [shape = 'u32[]', space=smem, size = 0x4, offset = 0x4, fixed_abs, tag = 'smem constant byte address 0x4 - core index']
  #allocation1 [shape = 'u32[72,128]{1,0:T(1,128)}', space=vmem, size = 0x9000, scoped, tag = 'internal scratch']
  %s0 = inlined_call_operand.hbm [shape: bf16[16,256], index: 0, kind: input, shape index: {}]
  %s1 = inlined_call_operand.hbm [shape: bf16[256,512], index: 1, kind: input, shape index: {}]
  %s2 = inlined_call_operand.hbm [shape: f32[1,512], index: 2, kind: input, shape index: {}]
  %s3 = inlined_call_operand.hbm [shape: f32[1,512], index: 3, kind: input, shape index: {}]
  %s4 = inlined_call_operand.hbm [shape: f32[1,512], index: 4, kind: input, shape index: {}]
  %s5 = inlined_call_operand.hbm [shape: bf16[512,256], index: 5, kind: input, shape index: {}]
  %s6 = inlined_call_operand.vmem [shape: f32[1,256], index: 6, kind: input, shape index: {}]
  %s7 = inlined_call_operand.vmem [shape: f32[1,256], index: 7, kind: input, shape index: {}]
  %s8 = inlined_call_operand.vmem [shape: f32[1,256], index: 8, kind: input, shape index: {}]
  %s9 = inlined_call_operand.hbm [shape: bf16[256,128], index: 9, kind: input, shape index: {}]
  %s10 = inlined_call_operand.vmem [shape: f32[1,128], index: 10, kind: input, shape index: {}]
  %s11 = inlined_call_operand.hbm [shape: f32[16,128], index: 11, kind: output, shape index: {}]
  %s12 = sld [smem:[#allocation0]]
  $region82: #{tpu_custom_call.1} parent=0
    _
  %s14 = ssub.s32 1, %s12
  %s15 = scalar_select 0, %s14, %s12
  $region1: #{tpu_custom_call.1} parent=0
    #allocation2 [shape = 'u8[8192]{0}', space=vmem, size = 0x2000, scoped, tag = 'input window, operand 0, single buffered']
    #allocation3 [shape = 's32[1]{0}', space=sflag, size = 0x4, scoped, tag = 'scoped memory for tpu_custom_call.1']
    #allocation4 [shape = 's32[1]{0}', space=sflag, size = 0x4, scoped, tag = 'scoped memory for tpu_custom_call.1']
    #allocation5 [shape = 'u8[262144]{0}', space=vmem, size = 0x40000, scoped, tag = 'input window, operand 1, single buffered']
    #allocation6 [shape = 's32[1]{0}', space=sflag, size = 0x4, scoped, tag = 'scoped memory for tpu_custom_call.1']
    #allocation7 [shape = 'u8[2048]{0}', space=vmem, size = 0x800, scoped, tag = 'input window, operand 2, single buffered']
    #allocation8 [shape = 'u8[2048]{0}', space=vmem, size = 0x800, scoped, tag = 'input window, operand 3, single buffered']
    #allocation9 [shape = 's32[1]{0}', space=sflag, size = 0x4, scoped, tag = 'scoped memory for tpu_custom_call.1']
    #allocation10 [shape = 'u8[2048]{0}', space=vmem, size = 0x800, scoped, tag = 'input window, operand 4, single buffered']
    #allocation11 [shape = 'u8[262144]{0}', space=vmem, size = 0x40000, scoped, tag = 'input window, operand 5, single buffered']
    #allocation12 [shape = 's32[1]{0}', space=sflag, size = 0x4, scoped, tag = 'scoped memory for tpu_custom_call.1']
    #allocation13 [shape = 'u8[65536]{0}', space=vmem, size = 0x10000, scoped, tag = 'input window, operand 9, single buffered']
    #allocation14 [shape = 'u8[8192]{0}', space=vmem, size = 0x2000, scoped, tag = 'output window, operand 0, single buffered']
    %16 = vsyncpa [#allocation3], 0
    %17 = vsyncpa [#allocation6], 0
    %18 = vsyncpa [#allocation9], 0
    %19 = vsyncpa [#allocation12], 0
    %20 = vsyncpa [#allocation4], 0
    // Predicated region
    $region2: #{tpu_custom_call.1} parent=1 // pred_check
      _
    $region3: #{tpu_custom_call.1} parent=1 // pred_check_branch
      %22 = sbr.rel (0) target = $region5
    $region4: #{tpu_custom_call.1} parent=1 // pred_region
      %24 = vsyncadd [#allocation3], 0
      %s25 = sshll.u32 %s0, 4
      %s26 = int_to_ptr.hbm [resolvable:$true] %s25
      %s27 = sshll.u32 [#allocation2], 4
      %s28 = int_to_ptr.vmem [resolvable:$true] %s27
      %33 = dma.hbm_to_vmem [thread:$0]  %s26, 256, %s28, [#allocation3], 128, 128, 8
    $region5: #{tpu_custom_call.1} parent=1 // pred_fallthru
      _
    // Predicated region
    $region6: #{tpu_custom_call.1} parent=1 // pred_check
      _
    $region7: #{tpu_custom_call.1} parent=1 // pred_check_branch
      %35 = sbr.rel (0) target = $region9
    $region8: #{tpu_custom_call.1} parent=1 // pred_region
      %37 = vsyncadd [#allocation6], 0
      %s38 = sshll.u32 %s1, 4
      %s39 = int_to_ptr.hbm [resolvable:$true] %s38
      %s40 = sshll.u32 [#allocation5], 4
      %s41 = int_to_ptr.vmem [resolvable:$true] %s40
      %46 = dma.hbm_to_vmem [thread:$0]  %s39, 8192, %s41, [#allocation6], 256, 256, 16
    $region9: #{tpu_custom_call.1} parent=1 // pred_fallthru
      _
    // Predicated region
    $region10: #{tpu_custom_call.1} parent=1 // pred_check
      _
    $region11: #{tpu_custom_call.1} parent=1 // pred_check_branch
      %48 = sbr.rel (0) target = $region13
    $region12: #{tpu_custom_call.1} parent=1 // pred_region
      %50 = vsyncadd [#allocation6], 0
      %s52 = sshll.u32 %s2, 4
      %s53 = int_to_ptr.hbm [resolvable:$true] %s52
      %s54 = sshll.u32 [#allocation7], 4
      %s55 = int_to_ptr.vmem [resolvable:$true] %s54
      %57 = dma.hbm_to_vmem [thread:$0]  %s53, 64, %s55, [#allocation6]
    $region13: #{tpu_custom_call.1} parent=1 // pred_fallthru
      _
    // Predicated region
    $region14: #{tpu_custom_call.1} parent=1 // pred_check
      _
    $region15: #{tpu_custom_call.1} parent=1 // pred_check_branch
      %59 = sbr.rel (0) target = $region17
    $region16: #{tpu_custom_call.1} parent=1 // pred_region
      %61 = vsyncadd [#allocation9], 0
      %s63 = sshll.u32 %s3, 4
      %s64 = int_to_ptr.hbm [resolvable:$true] %s63
      %s65 = sshll.u32 [#allocation8], 4
      %s66 = int_to_ptr.vmem [resolvable:$true] %s65
      %68 = dma.hbm_to_vmem [thread:$0]  %s64, 64, %s66, [#allocation9]
    $region17: #{tpu_custom_call.1} parent=1 // pred_fallthru
      _
    // Predicated region
    $region18: #{tpu_custom_call.1} parent=1 // pred_check
      _
    $region19: #{tpu_custom_call.1} parent=1 // pred_check_branch
      %70 = sbr.rel (0) target = $region21
    $region20: #{tpu_custom_call.1} parent=1 // pred_region
      %72 = vsyncadd [#allocation9], 0
      %s74 = sshll.u32 %s4, 4
      %s75 = int_to_ptr.hbm [resolvable:$true] %s74
      %s76 = sshll.u32 [#allocation10], 4
      %s77 = int_to_ptr.vmem [resolvable:$true] %s76
      %79 = dma.hbm_to_vmem [thread:$0]  %s75, 64, %s77, [#allocation9]
    $region21: #{tpu_custom_call.1} parent=1 // pred_fallthru
      _
    // Predicated region
    $region22: #{tpu_custom_call.1} parent=1 // pred_check
      _
    $region23: #{tpu_custom_call.1} parent=1 // pred_check_branch
      %81 = sbr.rel (0) target = $region25
    $region24: #{tpu_custom_call.1} parent=1 // pred_region
      %83 = vsyncadd [#allocation12], 0
      %s84 = sshll.u32 %s5, 4
      %s85 = int_to_ptr.hbm [resolvable:$true] %s84
      %s86 = sshll.u32 [#allocation11], 4
      %s87 = int_to_ptr.vmem [resolvable:$true] %s86
      %92 = dma.hbm_to_vmem [thread:$0]  %s85, 8192, %s87, [#allocation12], 128, 128, 8
    $region25: #{tpu_custom_call.1} parent=1 // pred_fallthru
      _
    // Predicated region
    $region26: #{tpu_custom_call.1} parent=1 // pred_check
      _
    $region27: #{tpu_custom_call.1} parent=1 // pred_check_branch
      %94 = sbr.rel (0) target = $region29
    $region28: #{tpu_custom_call.1} parent=1 // pred_region
      _
    $region29: #{tpu_custom_call.1} parent=1 // pred_fallthru
      _
    // Predicated region
    $region30: #{tpu_custom_call.1} parent=1 // pred_check
      _
    $region31: #{tpu_custom_call.1} parent=1 // pred_check_branch
      %96 = sbr.rel (0) target = $region33
    $region32: #{tpu_custom_call.1} parent=1 // pred_region
      _
    $region33: #{tpu_custom_call.1} parent=1 // pred_fallthru
      _
    // Predicated region
    $region34: #{tpu_custom_call.1} parent=1 // pred_check
      _
    $region35: #{tpu_custom_call.1} parent=1 // pred_check_branch
      %98 = sbr.rel (0) target = $region37
    $region36: #{tpu_custom_call.1} parent=1 // pred_region
      _
    $region37: #{tpu_custom_call.1} parent=1 // pred_fallthru
      _
    // Predicated region
    $region38: #{tpu_custom_call.1} parent=1 // pred_check
      _
    $region39: #{tpu_custom_call.1} parent=1 // pred_check_branch
      %100 = sbr.rel (0) target = $region41
    $region40: #{tpu_custom_call.1} parent=1 // pred_region
      %102 = vsyncadd [#allocation12], 0
      %s103 = sshll.u32 %s9, 4
      %s104 = int_to_ptr.hbm [resolvable:$true] %s103
      %s105 = sshll.u32 [#allocation13], 4
      %s106 = int_to_ptr.vmem [resolvable:$true] %s105
      %111 = dma.hbm_to_vmem [thread:$0]  %s104, 2048, %s106, [#allocation12], 64, 64, 4
    $region41: #{tpu_custom_call.1} parent=1 // pred_fallthru
      _
    // Predicated region
    $region42: #{tpu_custom_call.1} parent=1 // pred_check
      _
    $region43: #{tpu_custom_call.1} parent=1 // pred_check_branch
      %113 = sbr.rel (0) target = $region45
    $region44: #{tpu_custom_call.1} parent=1 // pred_region
      _
    $region45: #{tpu_custom_call.1} parent=1 // pred_fallthru
      _
    // Predicated region
    $region46: #{tpu_custom_call.1} parent=1 // pred_check
      _
    $region47: #{tpu_custom_call.1} parent=1 // pred_check_branch
      %115 = sbr.rel (0) target = $region49
    $region48: #{tpu_custom_call.1} parent=1 // pred_region
      %117 = dma.done [#allocation3], 256
    $region49: #{tpu_custom_call.1} parent=1 // pred_fallthru
      _
    // Predicated region
    $region50: #{tpu_custom_call.1} parent=1 // pred_check
      _
    $region51: #{tpu_custom_call.1} parent=1 // pred_check_branch
      %119 = sbr.rel (0) target = $region53
    $region52: #{tpu_custom_call.1} parent=1 // pred_region
      %121 = dma.done [#allocation6], 8192
    $region53: #{tpu_custom_call.1} parent=1 // pred_fallthru
      _
    // Predicated region
    $region54: #{tpu_custom_call.1} parent=1 // pred_check
      _
    $region55: #{tpu_custom_call.1} parent=1 // pred_check_branch
      %123 = sbr.rel (0) target = $region57
    $region56: #{tpu_custom_call.1} parent=1 // pred_region
      %125 = dma.done [#allocation6], 64
    $region57: #{tpu_custom_call.1} parent=1 // pred_fallthru
      _
    // Predicated region
    $region58: #{tpu_custom_call.1} parent=1 // pred_check
      _
    $region59: #{tpu_custom_call.1} parent=1 // pred_check_branch
      %127 = sbr.rel (0) target = $region61
    $region60: #{tpu_custom_call.1} parent=1 // pred_region
      %129 = dma.done [#allocation9], 64
    $region61: #{tpu_custom_call.1} parent=1 // pred_fallthru
      _
    // Predicated region
    $region62: #{tpu_custom_call.1} parent=1 // pred_check
      _
    $region63: #{tpu_custom_call.1} parent=1 // pred_check_branch
      %131 = sbr.rel (0) target = $region65
    $region64: #{tpu_custom_call.1} parent=1 // pred_region
      %133 = dma.done [#allocation9], 64
    $region65: #{tpu_custom_call.1} parent=1 // pred_fallthru
      _
    // Predicated region
    $region66: #{tpu_custom_call.1} parent=1 // pred_check
      _
    $region67: #{tpu_custom_call.1} parent=1 // pred_check_branch
      %135 = sbr.rel (0) target = $region69
    $region68: #{tpu_custom_call.1} parent=1 // pred_region
      %137 = dma.done [#allocation12], 8192
    $region69: #{tpu_custom_call.1} parent=1 // pred_fallthru
      _
    // Predicated region
    $region70: #{tpu_custom_call.1} parent=1 // pred_check
      _
    $region71: #{tpu_custom_call.1} parent=1 // pred_check_branch
      %139 = sbr.rel (0) target = $region73
    $region72: #{tpu_custom_call.1} parent=1 // pred_region
      %141 = dma.done [#allocation12], 2048
    $region73: #{tpu_custom_call.1} parent=1 // pred_fallthru
      _
    %v142 = vld [vmem:[#allocation2] sm:$0xff]
    %v143 = vld [vmem:[#allocation2 + $0x8] sm:$0xff]
    %v144 = vunpack.c.l.bf16 %v142
    %v145 = vunpack.c.h.bf16 %v142
    %v146 = vunpack.c.l.bf16 %v143
    %v147 = vunpack.c.h.bf16 %v143
    %v148 = vmul.f32 %v144, %v144
    %v149 = vmul.f32 %v145, %v145
    %v150 = vmul.f32 %v146, %v146
    %v151 = vmul.f32 %v147, %v147
    %v152 = vadd.f32 %v148, %v149
    %153 = vadd.xlane.f32.xlu0 %v152
    %v154 = vpop.xlane.xlu0 %153
    %v155 = vadd.f32 %v150, %v151
    %156 = vadd.xlane.f32.xlu0 %v155
    %v157 = vpop.xlane.xlu0 %156
    %vm158 = vcmp.gt.f32.partialorder %v154, 0.0
    %vm159 = vcmp.gt.f32.partialorder %v157, 0.0
    %v160 = vrsqrt.pop %v154
    %v161 = vmul.f32 %v160, %v154
    %v162 = vmul.f32 %v161, %v160
    %v163 = vmul.f32 0.5, %v162
    %v164 = vsub.f32 1.5, %v163
    %v165 = vmul.f32 %v160, %v164
    %vm166 = vweird.f32 %v154
    %vm167 = vweird.f32 %v160
    %vm168 = vmor %vm166, %vm167
    %v169 = vsel %vm168, %v160, %v165
    %v170 = vrsqrt.pop %v157
    %v171 = vmul.f32 %v170, %v157
    %v172 = vmul.f32 %v171, %v170
    %v173 = vmul.f32 0.5, %v172
    %v174 = vsub.f32 1.5, %v173
    %v175 = vmul.f32 %v170, %v174
    %vm176 = vweird.f32 %v157
    %vm177 = vweird.f32 %v170
    %vm178 = vmor %vm176, %vm177
    %v179 = vsel %vm178, %v170, %v175
    %v180 = vsel %vm158, %v169, 0.0
    %v181 = vsel %vm159, %v179, 0.0
    %v182 = vld [vmem:[#allocation5] sm:$0xff]
    %v183 = vld [vmem:[#allocation5 + $0x8] sm:$0xff]
    %v184 = vld [vmem:[#allocation5 + $0x10] sm:$0xff]
    %v185 = vld [vmem:[#allocation5 + $0x18] sm:$0xff]
    %v186 = vld [vmem:[#allocation5 + $0x20] sm:$0xff]
    %v187 = vld [vmem:[#allocation5 + $0x28] sm:$0xff]
    %v188 = vld [vmem:[#allocation5 + $0x30] sm:$0xff]
    %v189 = vld [vmem:[#allocation5 + $0x38] sm:$0xff]
    %v190 = vld [vmem:[#allocation5 + $0x40] sm:$0xff]
    %v191 = vld [vmem:[#allocation5 + $0x48] sm:$0xff]
    %v192 = vld [vmem:[#allocation5 + $0x50] sm:$0xff]
    %v193 = vld [vmem:[#allocation5 + $0x58] sm:$0xff]
    %v194 = vld [vmem:[#allocation5 + $0x60] sm:$0xff]
    %v195 = vld [vmem:[#allocation5 + $0x68] sm:$0xff]
    %v196 = vld [vmem:[#allocation5 + $0x70] sm:$0xff]
    %v197 = vld [vmem:[#allocation5 + $0x78] sm:$0xff]
    %v198 = vld [vmem:[#allocation5 + $0x80] sm:$0xff]
    %v199 = vld [vmem:[#allocation5 + $0x88] sm:$0xff]
    %v200 = vld [vmem:[#allocation5 + $0x90] sm:$0xff]
    %v201 = vld [vmem:[#allocation5 + $0x98] sm:$0xff]
    %v202 = vld [vmem:[#allocation5 + $0xa0] sm:$0xff]
    %v203 = vld [vmem:[#allocation5 + $0xa8] sm:$0xff]
    %v204 = vld [vmem:[#allocation5 + $0xb0] sm:$0xff]
    %v205 = vld [vmem:[#allocation5 + $0xb8] sm:$0xff]
    %v206 = vld [vmem:[#allocation5 + $0xc0] sm:$0xff]
    %v207 = vld [vmem:[#allocation5 + $0xc8] sm:$0xff]
    %v208 = vld [vmem:[#allocation5 + $0xd0] sm:$0xff]
    %v209 = vld [vmem:[#allocation5 + $0xd8] sm:$0xff]
    %v210 = vld [vmem:[#allocation5 + $0xe0] sm:$0xff]
    %v211 = vld [vmem:[#allocation5 + $0xe8] sm:$0xff]
    %v212 = vld [vmem:[#allocation5 + $0xf0] sm:$0xff]
    %v213 = vld [vmem:[#allocation5 + $0xf8] sm:$0xff]
    %v214 = vld [vmem:[#allocation5 + $0x100] sm:$0xff]
    %v215 = vld [vmem:[#allocation5 + $0x108] sm:$0xff]
    %v216 = vld [vmem:[#allocation5 + $0x110] sm:$0xff]
    %v217 = vld [vmem:[#allocation5 + $0x118] sm:$0xff]
    %v218 = vld [vmem:[#allocation5 + $0x120] sm:$0xff]
    %v219 = vld [vmem:[#allocation5 + $0x128] sm:$0xff]
    %v220 = vld [vmem:[#allocation5 + $0x130] sm:$0xff]
    %v221 = vld [vmem:[#allocation5 + $0x138] sm:$0xff]
    %v222 = vld [vmem:[#allocation5 + $0x140] sm:$0xff]
    %v223 = vld [vmem:[#allocation5 + $0x148] sm:$0xff]
    %v224 = vld [vmem:[#allocation5 + $0x150] sm:$0xff]
    %v225 = vld [vmem:[#allocation5 + $0x158] sm:$0xff]
    %v226 = vld [vmem:[#allocation5 + $0x160] sm:$0xff]
    %v227 = vld [vmem:[#allocation5 + $0x168] sm:$0xff]
    %v228 = vld [vmem:[#allocation5 + $0x170] sm:$0xff]
    %v229 = vld [vmem:[#allocation5 + $0x178] sm:$0xff]
    %v230 = vld [vmem:[#allocation5 + $0x180] sm:$0xff]
    %v231 = vld [vmem:[#allocation5 + $0x188] sm:$0xff]
    %v232 = vld [vmem:[#allocation5 + $0x190] sm:$0xff]
    %v233 = vld [vmem:[#allocation5 + $0x198] sm:$0xff]
    %v234 = vld [vmem:[#allocation5 + $0x1a0] sm:$0xff]
    %v235 = vld [vmem:[#allocation5 + $0x1a8] sm:$0xff]
    %v236 = vld [vmem:[#allocation5 + $0x1b0] sm:$0xff]
    %v237 = vld [vmem:[#allocation5 + $0x1b8] sm:$0xff]
    %v238 = vld [vmem:[#allocation5 + $0x1c0] sm:$0xff]
    %v239 = vld [vmem:[#allocation5 + $0x1c8] sm:$0xff]
    %v240 = vld [vmem:[#allocation5 + $0x1d0] sm:$0xff]
    %v241 = vld [vmem:[#allocation5 + $0x1d8] sm:$0xff]
    %v242 = vld [vmem:[#allocation5 + $0x1e0] sm:$0xff]
    %v243 = vld [vmem:[#allocation5 + $0x1e8] sm:$0xff]
    %v244 = vld [vmem:[#allocation5 + $0x1f0] sm:$0xff]
    %v245 = vld [vmem:[#allocation5 + $0x1f8] sm:$0xff]
    %v248 = vunpack.c.l.b16 %v142
    %v249 = vunpack.c.h.b16 %v142
    %v250 = vunpack.c.l.b16 %v143
    %v251 = vunpack.c.h.b16 %v143
    %v252 = vpack.c.b16 %v250, %v248
    %v253 = vpack.c.b16 %v251, %v249
    %v320 = vunpack.c.l.b16 %v182
    %v321 = vunpack.c.h.b16 %v182
    %v322 = vunpack.c.l.b16 %v183
    %v323 = vunpack.c.h.b16 %v183
    %v324 = vunpack.c.l.b16 %v184
    %v325 = vunpack.c.h.b16 %v184
    %v326 = vunpack.c.l.b16 %v185
    %v327 = vunpack.c.h.b16 %v185
    %v328 = vunpack.c.l.b16 %v186
    %v329 = vunpack.c.h.b16 %v186
    %v330 = vunpack.c.l.b16 %v187
    %v331 = vunpack.c.h.b16 %v187
    %v332 = vunpack.c.l.b16 %v188
    %v333 = vunpack.c.h.b16 %v188
    %v334 = vunpack.c.l.b16 %v189
    %v335 = vunpack.c.h.b16 %v189
    %v336 = vunpack.c.l.b16 %v190
    %v337 = vunpack.c.h.b16 %v190
    %v338 = vunpack.c.l.b16 %v191
    %v339 = vunpack.c.h.b16 %v191
    %v340 = vunpack.c.l.b16 %v192
    %v341 = vunpack.c.h.b16 %v192
    %v342 = vunpack.c.l.b16 %v193
    %v343 = vunpack.c.h.b16 %v193
    %v344 = vunpack.c.l.b16 %v194
    %v345 = vunpack.c.h.b16 %v194
    %v346 = vunpack.c.l.b16 %v195
    %v347 = vunpack.c.h.b16 %v195
    %v348 = vunpack.c.l.b16 %v196
    %v349 = vunpack.c.h.b16 %v196
    %v350 = vunpack.c.l.b16 %v197
    %v351 = vunpack.c.h.b16 %v197
    %v352 = vunpack.c.l.b16 %v198
    %v353 = vunpack.c.h.b16 %v198
    %v354 = vunpack.c.l.b16 %v199
    %v355 = vunpack.c.h.b16 %v199
    %v356 = vunpack.c.l.b16 %v200
    %v357 = vunpack.c.h.b16 %v200
    %v358 = vunpack.c.l.b16 %v201
    %v359 = vunpack.c.h.b16 %v201
    %v360 = vunpack.c.l.b16 %v202
    %v361 = vunpack.c.h.b16 %v202
    %v362 = vunpack.c.l.b16 %v203
    %v363 = vunpack.c.h.b16 %v203
    %v364 = vunpack.c.l.b16 %v204
    %v365 = vunpack.c.h.b16 %v204
    %v366 = vunpack.c.l.b16 %v205
    %v367 = vunpack.c.h.b16 %v205
    %v368 = vunpack.c.l.b16 %v206
    %v369 = vunpack.c.h.b16 %v206
    %v370 = vunpack.c.l.b16 %v207
    %v371 = vunpack.c.h.b16 %v207
    %v372 = vunpack.c.l.b16 %v208
    %v373 = vunpack.c.h.b16 %v208
    %v374 = vunpack.c.l.b16 %v209
    %v375 = vunpack.c.h.b16 %v209
    %v376 = vunpack.c.l.b16 %v210
    %v377 = vunpack.c.h.b16 %v210
    %v378 = vunpack.c.l.b16 %v211
    %v379 = vunpack.c.h.b16 %v211
    %v380 = vunpack.c.l.b16 %v212
    %v381 = vunpack.c.h.b16 %v212
    %v382 = vunpack.c.l.b16 %v213
    %v383 = vunpack.c.h.b16 %v213
    %v384 = vunpack.c.l.b16 %v214
    %v385 = vunpack.c.h.b16 %v214
    %v386 = vunpack.c.l.b16 %v215
    %v387 = vunpack.c.h.b16 %v215
    %v388 = vunpack.c.l.b16 %v216
    %v389 = vunpack.c.h.b16 %v216
    %v390 = vunpack.c.l.b16 %v217
    %v391 = vunpack.c.h.b16 %v217
    %v392 = vunpack.c.l.b16 %v218
    %v393 = vunpack.c.h.b16 %v218
    %v394 = vunpack.c.l.b16 %v219
    %v395 = vunpack.c.h.b16 %v219
    %v396 = vunpack.c.l.b16 %v220
    %v397 = vunpack.c.h.b16 %v220
    %v398 = vunpack.c.l.b16 %v221
    %v399 = vunpack.c.h.b16 %v221
    %v400 = vunpack.c.l.b16 %v222
    %v401 = vunpack.c.h.b16 %v222
    %v402 = vunpack.c.l.b16 %v223
    %v403 = vunpack.c.h.b16 %v223
    %v404 = vunpack.c.l.b16 %v224
    %v405 = vunpack.c.h.b16 %v224
    %v406 = vunpack.c.l.b16 %v225
    %v407 = vunpack.c.h.b16 %v225
    %v408 = vunpack.c.l.b16 %v226
    %v409 = vunpack.c.h.b16 %v226
    %v410 = vunpack.c.l.b16 %v227
    %v411 = vunpack.c.h.b16 %v227
    %v412 = vunpack.c.l.b16 %v228
    %v413 = vunpack.c.h.b16 %v228
    %v414 = vunpack.c.l.b16 %v229
    %v415 = vunpack.c.h.b16 %v229
    %v416 = vunpack.c.l.b16 %v230
    %v417 = vunpack.c.h.b16 %v230
    %v418 = vunpack.c.l.b16 %v231
    %v419 = vunpack.c.h.b16 %v231
    %v420 = vunpack.c.l.b16 %v232
    %v421 = vunpack.c.h.b16 %v232
    %v422 = vunpack.c.l.b16 %v233
    %v423 = vunpack.c.h.b16 %v233
    %v424 = vunpack.c.l.b16 %v234
    %v425 = vunpack.c.h.b16 %v234
    %v426 = vunpack.c.l.b16 %v235
    %v427 = vunpack.c.h.b16 %v235
    %v428 = vunpack.c.l.b16 %v236
    %v429 = vunpack.c.h.b16 %v236
    %v430 = vunpack.c.l.b16 %v237
    %v431 = vunpack.c.h.b16 %v237
    %v432 = vunpack.c.l.b16 %v238
    %v433 = vunpack.c.h.b16 %v238
    %v434 = vunpack.c.l.b16 %v239
    %v435 = vunpack.c.h.b16 %v239
    %v436 = vunpack.c.l.b16 %v240
    %v437 = vunpack.c.h.b16 %v240
    %v438 = vunpack.c.l.b16 %v241
    %v439 = vunpack.c.h.b16 %v241
    %v440 = vunpack.c.l.b16 %v242
    %v441 = vunpack.c.h.b16 %v242
    %v442 = vunpack.c.l.b16 %v243
    %v443 = vunpack.c.h.b16 %v243
    %v444 = vunpack.c.l.b16 %v244
    %v445 = vunpack.c.h.b16 %v244
    %v446 = vunpack.c.l.b16 %v245
    %v447 = vunpack.c.h.b16 %v245
    %v448 = vpack.c.b16 %v324, %v320
    %v449 = vpack.c.b16 %v325, %v321
    %v450 = vpack.c.b16 %v326, %v322
    %v451 = vpack.c.b16 %v327, %v323
    %v452 = vpack.c.b16 %v332, %v328
    %v453 = vpack.c.b16 %v333, %v329
    %v454 = vpack.c.b16 %v334, %v330
    %v455 = vpack.c.b16 %v335, %v331
    %v456 = vpack.c.b16 %v340, %v336
    %v457 = vpack.c.b16 %v341, %v337
    %v458 = vpack.c.b16 %v342, %v338
    %v459 = vpack.c.b16 %v343, %v339
    %v460 = vpack.c.b16 %v348, %v344
    %v461 = vpack.c.b16 %v349, %v345
    %v462 = vpack.c.b16 %v350, %v346
    %v463 = vpack.c.b16 %v351, %v347
    %v464 = vpack.c.b16 %v356, %v352
    %v465 = vpack.c.b16 %v357, %v353
    %v466 = vpack.c.b16 %v358, %v354
    %v467 = vpack.c.b16 %v359, %v355
    %v468 = vpack.c.b16 %v364, %v360
    %v469 = vpack.c.b16 %v365, %v361
    %v470 = vpack.c.b16 %v366, %v362
    %v471 = vpack.c.b16 %v367, %v363
    %v472 = vpack.c.b16 %v372, %v368
    %v473 = vpack.c.b16 %v373, %v369
    %v474 = vpack.c.b16 %v374, %v370
    %v475 = vpack.c.b16 %v375, %v371
    %v476 = vpack.c.b16 %v380, %v376
    %v477 = vpack.c.b16 %v381, %v377
    %v478 = vpack.c.b16 %v382, %v378
    %v479 = vpack.c.b16 %v383, %v379
    %v480 = vpack.c.b16 %v388, %v384
    %v481 = vpack.c.b16 %v389, %v385
    %v482 = vpack.c.b16 %v390, %v386
    %v483 = vpack.c.b16 %v391, %v387
    %v484 = vpack.c.b16 %v396, %v392
    %v485 = vpack.c.b16 %v397, %v393
    %v486 = vpack.c.b16 %v398, %v394
    %v487 = vpack.c.b16 %v399, %v395
    %v488 = vpack.c.b16 %v404, %v400
    %v489 = vpack.c.b16 %v405, %v401
    %v490 = vpack.c.b16 %v406, %v402
    %v491 = vpack.c.b16 %v407, %v403
    %v492 = vpack.c.b16 %v412, %v408
    %v493 = vpack.c.b16 %v413, %v409
    %v494 = vpack.c.b16 %v414, %v410
    %v495 = vpack.c.b16 %v415, %v411
    %v496 = vpack.c.b16 %v420, %v416
    %v497 = vpack.c.b16 %v421, %v417
    %v498 = vpack.c.b16 %v422, %v418
    %v499 = vpack.c.b16 %v423, %v419
    %v500 = vpack.c.b16 %v428, %v424
    %v501 = vpack.c.b16 %v429, %v425
    %v502 = vpack.c.b16 %v430, %v426
    %v503 = vpack.c.b16 %v431, %v427
    %v504 = vpack.c.b16 %v436, %v432
    %v505 = vpack.c.b16 %v437, %v433
    %v506 = vpack.c.b16 %v438, %v434
    %v507 = vpack.c.b16 %v439, %v435
    %v508 = vpack.c.b16 %v444, %v440
    %v509 = vpack.c.b16 %v445, %v441
    %v510 = vpack.c.b16 %v446, %v442
    %v511 = vpack.c.b16 %v447, %v443
    %576 = vmatpush.bf16.msra.mxu0 %v476
    %577 = vmatpush.bf16.msra.mxu0 %v472
    %578 = vmatpush.bf16.msra.mxu0 %v468
    %579 = vmatpush.bf16.msra.mxu0 %v464
    %580 = vmatpush.bf16.msra.mxu0 %v460
    %581 = vmatpush.bf16.msra.mxu0 %v456
    %582 = vmatpush.bf16.msra.mxu0 %v452
    %583 = vmatpush.bf16.msra.mxu0 %v448
    %584 = vmatmul.bf16.gmra.mxu0 %v252
    %v585 = vpop.f32.mrf.mxu0
    %v586 = vadd.f32 0.0, %v585
    %v587 = vpop.f32.mrf.mxu0
    %v588 = vadd.f32 0.0, %v587
    %589 = vdwg.mxu0
    %590 = vmatpush.bf16.msra.mxu0 %v508
    %591 = vmatpush.bf16.msra.mxu0 %v504
    %592 = vmatpush.bf16.msra.mxu0 %v500
    %593 = vmatpush.bf16.msra.mxu0 %v496
    %594 = vmatpush.bf16.msra.mxu0 %v492
    %595 = vmatpush.bf16.msra.mxu0 %v488
    %596 = vmatpush.bf16.msra.mxu0 %v484
    %597 = vmatpush.bf16.msra.mxu0 %v480
    %598 = vmatmul.bf16.gmra.mxu0 %v253
    %v599 = vpop.f32.mrf.mxu0
    %v600 = vadd.f32 %v586, %v599
    %v601 = vpop.f32.mrf.mxu0
    %v602 = vadd.f32 %v588, %v601
    %603 = vdwg.mxu0
    %604 = vmatpush.bf16.msra.mxu0 %v477
    %605 = vmatpush.bf16.msra.mxu0 %v473
    %606 = vmatpush.bf16.msra.mxu0 %v469
    %607 = vmatpush.bf16.msra.mxu0 %v465
    %608 = vmatpush.bf16.msra.mxu0 %v461
    %609 = vmatpush.bf16.msra.mxu0 %v457
    %610 = vmatpush.bf16.msra.mxu0 %v453
    %611 = vmatpush.bf16.msra.mxu0 %v449
    %612 = vmatmul.bf16.gmra.mxu0 %v252
    %v613 = vpop.f32.mrf.mxu0
    %v614 = vadd.f32 0.0, %v613
    %v615 = vpop.f32.mrf.mxu0
    %v616 = vadd.f32 0.0, %v615
    %617 = vdwg.mxu0
    %618 = vmatpush.bf16.msra.mxu0 %v509
    %619 = vmatpush.bf16.msra.mxu0 %v505
    %620 = vmatpush.bf16.msra.mxu0 %v501
    %621 = vmatpush.bf16.msra.mxu0 %v497
    %622 = vmatpush.bf16.msra.mxu0 %v493
    %623 = vmatpush.bf16.msra.mxu0 %v489
    %624 = vmatpush.bf16.msra.mxu0 %v485
    %625 = vmatpush.bf16.msra.mxu0 %v481
    %626 = vmatmul.bf16.gmra.mxu0 %v253
    %v627 = vpop.f32.mrf.mxu0
    %v628 = vadd.f32 %v614, %v627
    %v629 = vpop.f32.mrf.mxu0
    %v630 = vadd.f32 %v616, %v629
    %631 = vdwg.mxu0
    %632 = vmatpush.bf16.msra.mxu0 %v478
    %633 = vmatpush.bf16.msra.mxu0 %v474
    %634 = vmatpush.bf16.msra.mxu0 %v470
    %635 = vmatpush.bf16.msra.mxu0 %v466
    %636 = vmatpush.bf16.msra.mxu0 %v462
    %637 = vmatpush.bf16.msra.mxu0 %v458
    %638 = vmatpush.bf16.msra.mxu0 %v454
    %639 = vmatpush.bf16.msra.mxu0 %v450
    %640 = vmatmul.bf16.gmra.mxu0 %v252
    %v641 = vpop.f32.mrf.mxu0
    %v642 = vadd.f32 0.0, %v641
    %v643 = vpop.f32.mrf.mxu0
    %v644 = vadd.f32 0.0, %v643
    %645 = vdwg.mxu0
    %646 = vmatpush.bf16.msra.mxu0 %v510
    %647 = vmatpush.bf16.msra.mxu0 %v506
    %648 = vmatpush.bf16.msra.mxu0 %v502
    %649 = vmatpush.bf16.msra.mxu0 %v498
    %650 = vmatpush.bf16.msra.mxu0 %v494
    %651 = vmatpush.bf16.msra.mxu0 %v490
    %652 = vmatpush.bf16.msra.mxu0 %v486
    %653 = vmatpush.bf16.msra.mxu0 %v482
    %654 = vmatmul.bf16.gmra.mxu0 %v253
    %v655 = vpop.f32.mrf.mxu0
    %v656 = vadd.f32 %v642, %v655
    %v657 = vpop.f32.mrf.mxu0
    %v658 = vadd.f32 %v644, %v657
    %659 = vdwg.mxu0
    %660 = vmatpush.bf16.msra.mxu0 %v479
    %661 = vmatpush.bf16.msra.mxu0 %v475
    %662 = vmatpush.bf16.msra.mxu0 %v471
    %663 = vmatpush.bf16.msra.mxu0 %v467
    %664 = vmatpush.bf16.msra.mxu0 %v463
    %665 = vmatpush.bf16.msra.mxu0 %v459
    %666 = vmatpush.bf16.msra.mxu0 %v455
    %667 = vmatpush.bf16.msra.mxu0 %v451
    %668 = vmatmul.bf16.gmra.mxu0 %v252
    %v669 = vpop.f32.mrf.mxu0
    %v670 = vadd.f32 0.0, %v669
    %v671 = vpop.f32.mrf.mxu0
    %v672 = vadd.f32 0.0, %v671
    %673 = vdwg.mxu0
    %674 = vmatpush.bf16.msra.mxu0 %v511
    %675 = vmatpush.bf16.msra.mxu0 %v507
    %676 = vmatpush.bf16.msra.mxu0 %v503
    %677 = vmatpush.bf16.msra.mxu0 %v499
    %678 = vmatpush.bf16.msra.mxu0 %v495
    %679 = vmatpush.bf16.msra.mxu0 %v491
    %680 = vmatpush.bf16.msra.mxu0 %v487
    %681 = vmatpush.bf16.msra.mxu0 %v483
    %682 = vmatmul.bf16.gmra.mxu0 %v253
    %v683 = vpop.f32.mrf.mxu0
    %v684 = vadd.f32 %v670, %v683
    %v685 = vpop.f32.mrf.mxu0
    %v686 = vadd.f32 %v672, %v685
    %687 = vdwg.mxu0
    %v688 = vmul.f32 %v600, %v180
    %v689 = vmul.f32 %v628, %v180
    %v690 = vmul.f32 %v656, %v180
    %v691 = vmul.f32 %v684, %v180
    %v692 = vmul.f32 %v602, %v181
    %v693 = vmul.f32 %v630, %v181
    %v694 = vmul.f32 %v658, %v181
    %v695 = vmul.f32 %v686, %v181
    %v696 = vld [vmem:[#allocation7] sm:$0xf]
    %v698 = vperm.slane %v696, 0
    %v699 = vperm.slane %v696, 1
    %v700 = vperm.slane %v696, 2
    %v701 = vperm.slane %v696, 3
    %v706 = vadd.f32 %v688, %v698
    %v707 = vadd.f32 %v689, %v699
    %v708 = vadd.f32 %v690, %v700
    %v709 = vadd.f32 %v691, %v701
    %v710 = vadd.f32 %v692, %v698
    %v711 = vadd.f32 %v693, %v699
    %v712 = vadd.f32 %v694, %v700
    %v713 = vadd.f32 %v695, %v701
    %v714 = vld [vmem:[#allocation8] sm:$0xf]
    %v715 = vld [vmem:[#allocation10] sm:$0xf]
    %v716 = vadd.f32 %v706, %v707
    %v717 = vadd.f32 %v716, %v708
    %v718 = vadd.f32 %v717, %v709
    %719 = vadd.xlane.f32.xlu0 %v718
    %v720 = vpop.xlane.xlu0 %719
    %v721 = vadd.f32 %v710, %v711
    %v722 = vadd.f32 %v721, %v712
    %v723 = vadd.f32 %v722, %v713
    %724 = vadd.xlane.f32.xlu0 %v723
    %v725 = vpop.xlane.xlu0 %724
    %v726 = vrcp.pop 512.0
    %v727 = vmul.f32 512.0, %v726
    %v728 = vsub.f32 1.0, %v727
    %v729 = vmul.f32 %v726, %v728
    %v730 = vadd.f32 %v726, %v729
    %vm731 = vweird.f32 %v726
    %v732 = vsel %vm731, %v726, %v730
    %v733 = vmul.f32 %v720, %v732
    %v734 = vmul.f32 %v725, %v732
    %v735 = vmul.f32 %v706, %v706
    %v736 = vmul.f32 %v707, %v707
    %v737 = vmul.f32 %v708, %v708
    %v738 = vmul.f32 %v709, %v709
    %v739 = vmul.f32 %v710, %v710
    %v740 = vmul.f32 %v711, %v711
    %v741 = vmul.f32 %v712, %v712
    %v742 = vmul.f32 %v713, %v713
    %v743 = vadd.f32 %v735, %v736
    %v744 = vadd.f32 %v743, %v737
    %v745 = vadd.f32 %v744, %v738
    %746 = vadd.xlane.f32.xlu0 %v745
    %v747 = vpop.xlane.xlu0 %746
    %v748 = vadd.f32 %v739, %v740
    %v749 = vadd.f32 %v748, %v741
    %v750 = vadd.f32 %v749, %v742
    %751 = vadd.xlane.f32.xlu0 %v750
    %v752 = vpop.xlane.xlu0 %751
    %v753 = vmul.f32 %v747, %v732
    %v754 = vmul.f32 %v752, %v732
    %v755 = vmul.f32 %v733, %v733
    %v756 = vmul.f32 %v734, %v734
    %v757 = vsub.f32 %v753, %v755
    %v758 = vsub.f32 %v754, %v756
    %v759 = vmax.f32 %v757, 0.0
    %v760 = vmax.f32 %v758, 0.0
    %v761 = vsub.f32 %v706, %v733
    %v762 = vsub.f32 %v707, %v733
    %v763 = vsub.f32 %v708, %v733
    %v764 = vsub.f32 %v709, %v733
    %v765 = vsub.f32 %v710, %v734
    %v766 = vsub.f32 %v711, %v734
    %v767 = vsub.f32 %v712, %v734
    %v768 = vsub.f32 %v713, %v734
    %v769 = vadd.f32 %v759, 1e-05
    %v770 = vadd.f32 %v760, 1e-05
    %v771 = vrsqrt.pop %v769
    %v772 = vmul.f32 %v771, %v769
    %v773 = vmul.f32 %v772, %v771
    %v774 = vmul.f32 0.5, %v773
    %v775 = vsub.f32 1.5, %v774
    %v776 = vmul.f32 %v771, %v775
    %vm777 = vweird.f32 %v769
    %vm778 = vweird.f32 %v771
    %vm779 = vmor %vm777, %vm778
    %v780 = vsel %vm779, %v771, %v776
    %v781 = vrsqrt.pop %v770
    %v782 = vmul.f32 %v781, %v770
    %v783 = vmul.f32 %v782, %v781
    %v784 = vmul.f32 0.5, %v783
    %v785 = vsub.f32 1.5, %v784
    %v786 = vmul.f32 %v781, %v785
    %vm787 = vweird.f32 %v770
    %vm788 = vweird.f32 %v781
    %vm789 = vmor %vm787, %vm788
    %v790 = vsel %vm789, %v781, %v786
    %v791 = vmul.f32 %v761, %v780
    %v792 = vmul.f32 %v762, %v780
    %v793 = vmul.f32 %v763, %v780
    %v794 = vmul.f32 %v764, %v780
    %v795 = vmul.f32 %v765, %v790
    %v796 = vmul.f32 %v766, %v790
    %v797 = vmul.f32 %v767, %v790
    %v798 = vmul.f32 %v768, %v790
    %v800 = vperm.slane %v714, 0
    %v801 = vperm.slane %v714, 1
    %v802 = vperm.slane %v714, 2
    %v803 = vperm.slane %v714, 3
    %v808 = vmul.f32 %v791, %v800
    %v809 = vmul.f32 %v792, %v801
    %v810 = vmul.f32 %v793, %v802
    %v811 = vmul.f32 %v794, %v803
    %v812 = vmul.f32 %v795, %v800
    %v813 = vmul.f32 %v796, %v801
    %v814 = vmul.f32 %v797, %v802
    %v815 = vmul.f32 %v798, %v803
    %v817 = vperm.slane %v715, 0
    %v818 = vperm.slane %v715, 1
    %v819 = vperm.slane %v715, 2
    %v820 = vperm.slane %v715, 3
    %v825 = vadd.f32 %v808, %v817
    %v826 = vadd.f32 %v809, %v818
    %v827 = vadd.f32 %v810, %v819
    %v828 = vadd.f32 %v811, %v820
    %v829 = vadd.f32 %v812, %v817
    %v830 = vadd.f32 %v813, %v818
    %v831 = vadd.f32 %v814, %v819
    %v832 = vadd.f32 %v815, %v820
    %v833 = vmul.f32 %v825, 0.2
    %v834 = vmul.f32 %v826, 0.2
    %v835 = vmul.f32 %v827, 0.2
    %v836 = vmul.f32 %v828, 0.2
    %v837 = vmul.f32 %v829, 0.2
    %v838 = vmul.f32 %v830, 0.2
    %v839 = vmul.f32 %v831, 0.2
    %v840 = vmul.f32 %v832, 0.2
    %v841 = vmax.f32 %v825, %v833
    %v842 = vmax.f32 %v826, %v834
    %v843 = vmax.f32 %v827, %v835
    %v844 = vmax.f32 %v828, %v836
    %v845 = vmax.f32 %v829, %v837
    %v846 = vmax.f32 %v830, %v838
    %v847 = vmax.f32 %v831, %v839
    %v848 = vmax.f32 %v832, %v840
    %v849 = vmul.f32 %v841, %v841
    %v850 = vmul.f32 %v842, %v842
    %v851 = vmul.f32 %v843, %v843
    %v852 = vmul.f32 %v844, %v844
    %v853 = vmul.f32 %v845, %v845
    %v854 = vmul.f32 %v846, %v846
    %v855 = vmul.f32 %v847, %v847
    %v856 = vmul.f32 %v848, %v848
    %v857 = vadd.f32 %v849, %v850
    %v858 = vadd.f32 %v857, %v851
    %v859 = vadd.f32 %v858, %v852
    %860 = vadd.xlane.f32.xlu0 %v859
    %v861 = vpop.xlane.xlu0 %860
    %v862 = vadd.f32 %v853, %v854
    %v863 = vadd.f32 %v862, %v855
    %v864 = vadd.f32 %v863, %v856
    %865 = vadd.xlane.f32.xlu0 %v864
    %v866 = vpop.xlane.xlu0 %865
    %vm867 = vcmp.gt.f32.partialorder %v861, 0.0
    %vm868 = vcmp.gt.f32.partialorder %v866, 0.0
    %v869 = vrsqrt.pop %v861
    %v870 = vmul.f32 %v869, %v861
    %v871 = vmul.f32 %v870, %v869
    %v872 = vmul.f32 0.5, %v871
    %v873 = vsub.f32 1.5, %v872
    %v874 = vmul.f32 %v869, %v873
    %vm875 = vweird.f32 %v861
    %vm876 = vweird.f32 %v869
    %vm877 = vmor %vm875, %vm876
    %v878 = vsel %vm877, %v869, %v874
    %v879 = vrsqrt.pop %v866
    %v880 = vmul.f32 %v879, %v866
    %v881 = vmul.f32 %v880, %v879
    %v882 = vmul.f32 0.5, %v881
    %v883 = vsub.f32 1.5, %v882
    %v884 = vmul.f32 %v879, %v883
    %vm885 = vweird.f32 %v866
    %vm886 = vweird.f32 %v879
    %vm887 = vmor %vm885, %vm886
    %v888 = vsel %vm887, %v879, %v884
    %v889 = vsel %vm867, %v878, 0.0
    %v890 = vsel %vm868, %v888, 0.0
    %v891 = vpack.c.bf16 %v845, %v841
    %v892 = vpack.c.bf16 %v846, %v842
    %v893 = vpack.c.bf16 %v847, %v843
    %v894 = vpack.c.bf16 %v848, %v844
    %v895 = vld [vmem:[#allocation11] sm:$0xff]
    %v896 = vld [vmem:[#allocation11 + $0x8] sm:$0xff]
    %v897 = vld [vmem:[#allocation11 + $0x10] sm:$0xff]
    %v898 = vld [vmem:[#allocation11 + $0x18] sm:$0xff]
    %v899 = vld [vmem:[#allocation11 + $0x20] sm:$0xff]
    %v900 = vld [vmem:[#allocation11 + $0x28] sm:$0xff]
    %v901 = vld [vmem:[#allocation11 + $0x30] sm:$0xff]
    %v902 = vld [vmem:[#allocation11 + $0x38] sm:$0xff]
    %v903 = vld [vmem:[#allocation11 + $0x40] sm:$0xff]
    %v904 = vld [vmem:[#allocation11 + $0x48] sm:$0xff]
    %v905 = vld [vmem:[#allocation11 + $0x50] sm:$0xff]
    %v906 = vld [vmem:[#allocation11 + $0x58] sm:$0xff]
    %v907 = vld [vmem:[#allocation11 + $0x60] sm:$0xff]
    %v908 = vld [vmem:[#allocation11 + $0x68] sm:$0xff]
    %v909 = vld [vmem:[#allocation11 + $0x70] sm:$0xff]
    %v910 = vld [vmem:[#allocation11 + $0x78] sm:$0xff]
    %v911 = vld [vmem:[#allocation11 + $0x80] sm:$0xff]
    %v912 = vld [vmem:[#allocation11 + $0x88] sm:$0xff]
    %v913 = vld [vmem:[#allocation11 + $0x90] sm:$0xff]
    %v914 = vld [vmem:[#allocation11 + $0x98] sm:$0xff]
    %v915 = vld [vmem:[#allocation11 + $0xa0] sm:$0xff]
    %v916 = vld [vmem:[#allocation11 + $0xa8] sm:$0xff]
    %v917 = vld [vmem:[#allocation11 + $0xb0] sm:$0xff]
    %v918 = vld [vmem:[#allocation11 + $0xb8] sm:$0xff]
    %v919 = vld [vmem:[#allocation11 + $0xc0] sm:$0xff]
    %v920 = vld [vmem:[#allocation11 + $0xc8] sm:$0xff]
    %v921 = vld [vmem:[#allocation11 + $0xd0] sm:$0xff]
    %v922 = vld [vmem:[#allocation11 + $0xd8] sm:$0xff]
    %v923 = vld [vmem:[#allocation11 + $0xe0] sm:$0xff]
    %v924 = vld [vmem:[#allocation11 + $0xe8] sm:$0xff]
    %v925 = vld [vmem:[#allocation11 + $0xf0] sm:$0xff]
    %v926 = vld [vmem:[#allocation11 + $0xf8] sm:$0xff]
    %v927 = vld [vmem:[#allocation11 + $0x100] sm:$0xff]
    %v928 = vld [vmem:[#allocation11 + $0x108] sm:$0xff]
    %v929 = vld [vmem:[#allocation11 + $0x110] sm:$0xff]
    %v930 = vld [vmem:[#allocation11 + $0x118] sm:$0xff]
    %v931 = vld [vmem:[#allocation11 + $0x120] sm:$0xff]
    %v932 = vld [vmem:[#allocation11 + $0x128] sm:$0xff]
    %v933 = vld [vmem:[#allocation11 + $0x130] sm:$0xff]
    %v934 = vld [vmem:[#allocation11 + $0x138] sm:$0xff]
    %v935 = vld [vmem:[#allocation11 + $0x140] sm:$0xff]
    %v936 = vld [vmem:[#allocation11 + $0x148] sm:$0xff]
    %v937 = vld [vmem:[#allocation11 + $0x150] sm:$0xff]
    %v938 = vld [vmem:[#allocation11 + $0x158] sm:$0xff]
    %v939 = vld [vmem:[#allocation11 + $0x160] sm:$0xff]
    %v940 = vld [vmem:[#allocation11 + $0x168] sm:$0xff]
    %v941 = vld [vmem:[#allocation11 + $0x170] sm:$0xff]
    %v942 = vld [vmem:[#allocation11 + $0x178] sm:$0xff]
    %v943 = vld [vmem:[#allocation11 + $0x180] sm:$0xff]
    %v944 = vld [vmem:[#allocation11 + $0x188] sm:$0xff]
    %v945 = vld [vmem:[#allocation11 + $0x190] sm:$0xff]
    %v946 = vld [vmem:[#allocation11 + $0x198] sm:$0xff]
    %v947 = vld [vmem:[#allocation11 + $0x1a0] sm:$0xff]
    %v948 = vld [vmem:[#allocation11 + $0x1a8] sm:$0xff]
    %v949 = vld [vmem:[#allocation11 + $0x1b0] sm:$0xff]
    %v950 = vld [vmem:[#allocation11 + $0x1b8] sm:$0xff]
    %v951 = vld [vmem:[#allocation11 + $0x1c0] sm:$0xff]
    %v952 = vld [vmem:[#allocation11 + $0x1c8] sm:$0xff]
    %v953 = vld [vmem:[#allocation11 + $0x1d0] sm:$0xff]
    %v954 = vld [vmem:[#allocation11 + $0x1d8] sm:$0xff]
    %v955 = vld [vmem:[#allocation11 + $0x1e0] sm:$0xff]
    %v956 = vld [vmem:[#allocation11 + $0x1e8] sm:$0xff]
    %v957 = vld [vmem:[#allocation11 + $0x1f0] sm:$0xff]
    %v958 = vld [vmem:[#allocation11 + $0x1f8] sm:$0xff]
    %v1023 = vunpack.c.l.b16 %v895
    %v1024 = vunpack.c.h.b16 %v895
    %v1025 = vunpack.c.l.b16 %v896
    %v1026 = vunpack.c.h.b16 %v896
    %v1027 = vunpack.c.l.b16 %v897
    %v1028 = vunpack.c.h.b16 %v897
    %v1029 = vunpack.c.l.b16 %v898
    %v1030 = vunpack.c.h.b16 %v898
    %v1031 = vunpack.c.l.b16 %v899
    %v1032 = vunpack.c.h.b16 %v899
    %v1033 = vunpack.c.l.b16 %v900
    %v1034 = vunpack.c.h.b16 %v900
    %v1035 = vunpack.c.l.b16 %v901
    %v1036 = vunpack.c.h.b16 %v901
    %v1037 = vunpack.c.l.b16 %v902
    %v1038 = vunpack.c.h.b16 %v902
    %v1039 = vunpack.c.l.b16 %v903
    %v1040 = vunpack.c.h.b16 %v903
    %v1041 = vunpack.c.l.b16 %v904
    %v1042 = vunpack.c.h.b16 %v904
    %v1043 = vunpack.c.l.b16 %v905
    %v1044 = vunpack.c.h.b16 %v905
    %v1045 = vunpack.c.l.b16 %v906
    %v1046 = vunpack.c.h.b16 %v906
    %v1047 = vunpack.c.l.b16 %v907
    %v1048 = vunpack.c.h.b16 %v907
    %v1049 = vunpack.c.l.b16 %v908
    %v1050 = vunpack.c.h.b16 %v908
    %v1051 = vunpack.c.l.b16 %v909
    %v1052 = vunpack.c.h.b16 %v909
    %v1053 = vunpack.c.l.b16 %v910
    %v1054 = vunpack.c.h.b16 %v910
    %v1055 = vunpack.c.l.b16 %v911
    %v1056 = vunpack.c.h.b16 %v911
    %v1057 = vunpack.c.l.b16 %v912
    %v1058 = vunpack.c.h.b16 %v912
    %v1059 = vunpack.c.l.b16 %v913
    %v1060 = vunpack.c.h.b16 %v913
    %v1061 = vunpack.c.l.b16 %v914
    %v1062 = vunpack.c.h.b16 %v914
    %v1063 = vunpack.c.l.b16 %v915
    %v1064 = vunpack.c.h.b16 %v915
    %v1065 = vunpack.c.l.b16 %v916
    %v1066 = vunpack.c.h.b16 %v916
    %v1067 = vunpack.c.l.b16 %v917
    %v1068 = vunpack.c.h.b16 %v917
    %v1069 = vunpack.c.l.b16 %v918
    %v1070 = vunpack.c.h.b16 %v918
    %v1071 = vunpack.c.l.b16 %v919
    %v1072 = vunpack.c.h.b16 %v919
    %v1073 = vunpack.c.l.b16 %v920
    %v1074 = vunpack.c.h.b16 %v920
    %v1075 = vunpack.c.l.b16 %v921
    %v1076 = vunpack.c.h.b16 %v921
    %v1077 = vunpack.c.l.b16 %v922
    %v1078 = vunpack.c.h.b16 %v922
    %v1079 = vunpack.c.l.b16 %v923
    %v1080 = vunpack.c.h.b16 %v923
    %v1081 = vunpack.c.l.b16 %v924
    %v1082 = vunpack.c.h.b16 %v924
    %v1083 = vunpack.c.l.b16 %v925
    %v1084 = vunpack.c.h.b16 %v925
    %v1085 = vunpack.c.l.b16 %v926
    %v1086 = vunpack.c.h.b16 %v926
    %v1087 = vunpack.c.l.b16 %v927
    %v1088 = vunpack.c.h.b16 %v927
    %v1089 = vunpack.c.l.b16 %v928
    %v1090 = vunpack.c.h.b16 %v928
    %v1091 = vunpack.c.l.b16 %v929
    %v1092 = vunpack.c.h.b16 %v929
    %v1093 = vunpack.c.l.b16 %v930
    %v1094 = vunpack.c.h.b16 %v930
    %v1095 = vunpack.c.l.b16 %v931
    %v1096 = vunpack.c.h.b16 %v931
    %v1097 = vunpack.c.l.b16 %v932
    %v1098 = vunpack.c.h.b16 %v932
    %v1099 = vunpack.c.l.b16 %v933
    %v1100 = vunpack.c.h.b16 %v933
    %v1101 = vunpack.c.l.b16 %v934
    %v1102 = vunpack.c.h.b16 %v934
    %v1103 = vunpack.c.l.b16 %v935
    %v1104 = vunpack.c.h.b16 %v935
    %v1105 = vunpack.c.l.b16 %v936
    %v1106 = vunpack.c.h.b16 %v936
    %v1107 = vunpack.c.l.b16 %v937
    %v1108 = vunpack.c.h.b16 %v937
    %v1109 = vunpack.c.l.b16 %v938
    %v1110 = vunpack.c.h.b16 %v938
    %v1111 = vunpack.c.l.b16 %v939
    %v1112 = vunpack.c.h.b16 %v939
    %v1113 = vunpack.c.l.b16 %v940
    %v1114 = vunpack.c.h.b16 %v940
    %v1115 = vunpack.c.l.b16 %v941
    %v1116 = vunpack.c.h.b16 %v941
    %v1117 = vunpack.c.l.b16 %v942
    %v1118 = vunpack.c.h.b16 %v942
    %v1119 = vunpack.c.l.b16 %v943
    %v1120 = vunpack.c.h.b16 %v943
    %v1121 = vunpack.c.l.b16 %v944
    %v1122 = vunpack.c.h.b16 %v944
    %v1123 = vunpack.c.l.b16 %v945
    %v1124 = vunpack.c.h.b16 %v945
    %v1125 = vunpack.c.l.b16 %v946
    %v1126 = vunpack.c.h.b16 %v946
    %v1127 = vunpack.c.l.b16 %v947
    %v1128 = vunpack.c.h.b16 %v947
    %v1129 = vunpack.c.l.b16 %v948
    %v1130 = vunpack.c.h.b16 %v948
    %v1131 = vunpack.c.l.b16 %v949
    %v1132 = vunpack.c.h.b16 %v949
    %v1133 = vunpack.c.l.b16 %v950
    %v1134 = vunpack.c.h.b16 %v950
    %v1135 = vunpack.c.l.b16 %v951
    %v1136 = vunpack.c.h.b16 %v951
    %v1137 = vunpack.c.l.b16 %v952
    %v1138 = vunpack.c.h.b16 %v952
    %v1139 = vunpack.c.l.b16 %v953
    %v1140 = vunpack.c.h.b16 %v953
    %v1141 = vunpack.c.l.b16 %v954
    %v1142 = vunpack.c.h.b16 %v954
    %v1143 = vunpack.c.l.b16 %v955
    %v1144 = vunpack.c.h.b16 %v955
    %v1145 = vunpack.c.l.b16 %v956
    %v1146 = vunpack.c.h.b16 %v956
    %v1147 = vunpack.c.l.b16 %v957
    %v1148 = vunpack.c.h.b16 %v957
    %v1149 = vunpack.c.l.b16 %v958
    %v1150 = vunpack.c.h.b16 %v958
    %v1151 = vpack.c.b16 %v1025, %v1023
    %v1152 = vpack.c.b16 %v1026, %v1024
    %v1153 = vpack.c.b16 %v1029, %v1027
    %v1154 = vpack.c.b16 %v1030, %v1028
    %v1155 = vpack.c.b16 %v1033, %v1031
    %v1156 = vpack.c.b16 %v1034, %v1032
    %v1157 = vpack.c.b16 %v1037, %v1035
    %v1158 = vpack.c.b16 %v1038, %v1036
    %v1159 = vpack.c.b16 %v1041, %v1039
    %v1160 = vpack.c.b16 %v1042, %v1040
    %v1161 = vpack.c.b16 %v1045, %v1043
    %v1162 = vpack.c.b16 %v1046, %v1044
    %v1163 = vpack.c.b16 %v1049, %v1047
    %v1164 = vpack.c.b16 %v1050, %v1048
    %v1165 = vpack.c.b16 %v1053, %v1051
    %v1166 = vpack.c.b16 %v1054, %v1052
    %v1167 = vpack.c.b16 %v1057, %v1055
    %v1168 = vpack.c.b16 %v1058, %v1056
    %v1169 = vpack.c.b16 %v1061, %v1059
    %v1170 = vpack.c.b16 %v1062, %v1060
    %v1171 = vpack.c.b16 %v1065, %v1063
    %v1172 = vpack.c.b16 %v1066, %v1064
    %v1173 = vpack.c.b16 %v1069, %v1067
    %v1174 = vpack.c.b16 %v1070, %v1068
    %v1175 = vpack.c.b16 %v1073, %v1071
    %v1176 = vpack.c.b16 %v1074, %v1072
    %v1177 = vpack.c.b16 %v1077, %v1075
    %v1178 = vpack.c.b16 %v1078, %v1076
    %v1179 = vpack.c.b16 %v1081, %v1079
    %v1180 = vpack.c.b16 %v1082, %v1080
    %v1181 = vpack.c.b16 %v1085, %v1083
    %v1182 = vpack.c.b16 %v1086, %v1084
    %v1183 = vpack.c.b16 %v1089, %v1087
    %v1184 = vpack.c.b16 %v1090, %v1088
    %v1185 = vpack.c.b16 %v1093, %v1091
    %v1186 = vpack.c.b16 %v1094, %v1092
    %v1187 = vpack.c.b16 %v1097, %v1095
    %v1188 = vpack.c.b16 %v1098, %v1096
    %v1189 = vpack.c.b16 %v1101, %v1099
    %v1190 = vpack.c.b16 %v1102, %v1100
    %v1191 = vpack.c.b16 %v1105, %v1103
    %v1192 = vpack.c.b16 %v1106, %v1104
    %v1193 = vpack.c.b16 %v1109, %v1107
    %v1194 = vpack.c.b16 %v1110, %v1108
    %v1195 = vpack.c.b16 %v1113, %v1111
    %v1196 = vpack.c.b16 %v1114, %v1112
    %v1197 = vpack.c.b16 %v1117, %v1115
    %v1198 = vpack.c.b16 %v1118, %v1116
    %v1199 = vpack.c.b16 %v1121, %v1119
    %v1200 = vpack.c.b16 %v1122, %v1120
    %v1201 = vpack.c.b16 %v1125, %v1123
    %v1202 = vpack.c.b16 %v1126, %v1124
    %v1203 = vpack.c.b16 %v1129, %v1127
    %v1204 = vpack.c.b16 %v1130, %v1128
    %v1205 = vpack.c.b16 %v1133, %v1131
    %v1206 = vpack.c.b16 %v1134, %v1132
    %v1207 = vpack.c.b16 %v1137, %v1135
    %v1208 = vpack.c.b16 %v1138, %v1136
    %v1209 = vpack.c.b16 %v1141, %v1139
    %v1210 = vpack.c.b16 %v1142, %v1140
    %v1211 = vpack.c.b16 %v1145, %v1143
    %v1212 = vpack.c.b16 %v1146, %v1144
    %v1213 = vpack.c.b16 %v1149, %v1147
    %v1214 = vpack.c.b16 %v1150, %v1148
    %1279 = vmatpush.bf16.msra.mxu0 %v1165
    %1280 = vmatpush.bf16.msra.mxu0 %v1163
    %1281 = vmatpush.bf16.msra.mxu0 %v1161
    %1282 = vmatpush.bf16.msra.mxu0 %v1159
    %1283 = vmatpush.bf16.msra.mxu0 %v1157
    %1284 = vmatpush.bf16.msra.mxu0 %v1155
    %1285 = vmatpush.bf16.msra.mxu0 %v1153
    %1286 = vmatpush.bf16.msra.mxu0 %v1151
    %1287 = vmatmul.bf16.gmra.mxu0 %v891
    %v1288 = vpop.f32.mrf.mxu0
    %v1289 = vadd.f32 0.0, %v1288
    %v1290 = vpop.f32.mrf.mxu0
    %v1291 = vadd.f32 0.0, %v1290
    %1292 = vdwg.mxu0
    %1293 = vmatpush.bf16.msra.mxu0 %v1181
    %1294 = vmatpush.bf16.msra.mxu0 %v1179
    %1295 = vmatpush.bf16.msra.mxu0 %v1177
    %1296 = vmatpush.bf16.msra.mxu0 %v1175
    %1297 = vmatpush.bf16.msra.mxu0 %v1173
    %1298 = vmatpush.bf16.msra.mxu0 %v1171
    %1299 = vmatpush.bf16.msra.mxu0 %v1169
    %1300 = vmatpush.bf16.msra.mxu0 %v1167
    %1301 = vmatmul.bf16.gmra.mxu0 %v892
    %v1302 = vpop.f32.mrf.mxu0
    %v1303 = vadd.f32 %v1289, %v1302
    %v1304 = vpop.f32.mrf.mxu0
    %v1305 = vadd.f32 %v1291, %v1304
    %1306 = vdwg.mxu0
    %1307 = vmatpush.bf16.msra.mxu0 %v1197
    %1308 = vmatpush.bf16.msra.mxu0 %v1195
    %1309 = vmatpush.bf16.msra.mxu0 %v1193
    %1310 = vmatpush.bf16.msra.mxu0 %v1191
    %1311 = vmatpush.bf16.msra.mxu0 %v1189
    %1312 = vmatpush.bf16.msra.mxu0 %v1187
    %1313 = vmatpush.bf16.msra.mxu0 %v1185
    %1314 = vmatpush.bf16.msra.mxu0 %v1183
    %1315 = vmatmul.bf16.gmra.mxu0 %v893
    %v1316 = vpop.f32.mrf.mxu0
    %v1317 = vadd.f32 %v1303, %v1316
    %v1318 = vpop.f32.mrf.mxu0
    %v1319 = vadd.f32 %v1305, %v1318
    %1320 = vdwg.mxu0
    %1321 = vmatpush.bf16.msra.mxu0 %v1213
    %1322 = vmatpush.bf16.msra.mxu0 %v1211
    %1323 = vmatpush.bf16.msra.mxu0 %v1209
    %1324 = vmatpush.bf16.msra.mxu0 %v1207
    %1325 = vmatpush.bf16.msra.mxu0 %v1205
    %1326 = vmatpush.bf16.msra.mxu0 %v1203
    %1327 = vmatpush.bf16.msra.mxu0 %v1201
    %1328 = vmatpush.bf16.msra.mxu0 %v1199
    %1329 = vmatmul.bf16.gmra.mxu0 %v894
    %v1330 = vpop.f32.mrf.mxu0
    %v1331 = vadd.f32 %v1317, %v1330
    %v1332 = vpop.f32.mrf.mxu0
    %v1333 = vadd.f32 %v1319, %v1332
    %1334 = vdwg.mxu0
    %1335 = vmatpush.bf16.msra.mxu0 %v1166
    %1336 = vmatpush.bf16.msra.mxu0 %v1164
    %1337 = vmatpush.bf16.msra.mxu0 %v1162
    %1338 = vmatpush.bf16.msra.mxu0 %v1160
    %1339 = vmatpush.bf16.msra.mxu0 %v1158
    %1340 = vmatpush.bf16.msra.mxu0 %v1156
    %1341 = vmatpush.bf16.msra.mxu0 %v1154
    %1342 = vmatpush.bf16.msra.mxu0 %v1152
    %1343 = vmatmul.bf16.gmra.mxu0 %v891
    %v1344 = vpop.f32.mrf.mxu0
    %v1345 = vadd.f32 0.0, %v1344
    %v1346 = vpop.f32.mrf.mxu0
    %v1347 = vadd.f32 0.0, %v1346
    %1348 = vdwg.mxu0
    %1349 = vmatpush.bf16.msra.mxu0 %v1182
    %1350 = vmatpush.bf16.msra.mxu0 %v1180
    %1351 = vmatpush.bf16.msra.mxu0 %v1178
    %1352 = vmatpush.bf16.msra.mxu0 %v1176
    %1353 = vmatpush.bf16.msra.mxu0 %v1174
    %1354 = vmatpush.bf16.msra.mxu0 %v1172
    %1355 = vmatpush.bf16.msra.mxu0 %v1170
    %1356 = vmatpush.bf16.msra.mxu0 %v1168
    %1357 = vmatmul.bf16.gmra.mxu0 %v892
    %v1358 = vpop.f32.mrf.mxu0
    %v1359 = vadd.f32 %v1345, %v1358
    %v1360 = vpop.f32.mrf.mxu0
    %v1361 = vadd.f32 %v1347, %v1360
    %1362 = vdwg.mxu0
    %1363 = vmatpush.bf16.msra.mxu0 %v1198
    %1364 = vmatpush.bf16.msra.mxu0 %v1196
    %1365 = vmatpush.bf16.msra.mxu0 %v1194
    %1366 = vmatpush.bf16.msra.mxu0 %v1192
    %1367 = vmatpush.bf16.msra.mxu0 %v1190
    %1368 = vmatpush.bf16.msra.mxu0 %v1188
    %1369 = vmatpush.bf16.msra.mxu0 %v1186
    %1370 = vmatpush.bf16.msra.mxu0 %v1184
    %1371 = vmatmul.bf16.gmra.mxu0 %v893
    %v1372 = vpop.f32.mrf.mxu0
    %v1373 = vadd.f32 %v1359, %v1372
    %v1374 = vpop.f32.mrf.mxu0
    %v1375 = vadd.f32 %v1361, %v1374
    %1376 = vdwg.mxu0
    %1377 = vmatpush.bf16.msra.mxu0 %v1214
    %1378 = vmatpush.bf16.msra.mxu0 %v1212
    %1379 = vmatpush.bf16.msra.mxu0 %v1210
    %1380 = vmatpush.bf16.msra.mxu0 %v1208
    %1381 = vmatpush.bf16.msra.mxu0 %v1206
    %1382 = vmatpush.bf16.msra.mxu0 %v1204
    %1383 = vmatpush.bf16.msra.mxu0 %v1202
    %1384 = vmatpush.bf16.msra.mxu0 %v1200
    %1385 = vmatmul.bf16.gmra.mxu0 %v894
    %v1386 = vpop.f32.mrf.mxu0
    %v1387 = vadd.f32 %v1373, %v1386
    %v1388 = vpop.f32.mrf.mxu0
    %v1389 = vadd.f32 %v1375, %v1388
    %1390 = vdwg.mxu0
    %v1391 = vmul.f32 %v1331, %v889
    %v1392 = vmul.f32 %v1387, %v889
    %v1393 = vmul.f32 %v1333, %v890
    %v1394 = vmul.f32 %v1389, %v890
    %v1395 = vld [vmem:[%s6] sm:$0x3]
    %v1397 = vperm.slane %v1395, 0
    %v1398 = vperm.slane %v1395, 1
    %v1401 = vadd.f32 %v1391, %v1397
    %v1402 = vadd.f32 %v1392, %v1398
    %v1403 = vadd.f32 %v1393, %v1397
    %v1404 = vadd.f32 %v1394, %v1398
    %v1405 = vld [vmem:[%s7] sm:$0x3]
    %v1406 = vld [vmem:[%s8] sm:$0x3]
    %v1407 = vadd.f32 %v1401, %v1402
    %1408 = vadd.xlane.f32.xlu0 %v1407
    %v1409 = vpop.xlane.xlu0 %1408
    %v1410 = vadd.f32 %v1403, %v1404
    %1411 = vadd.xlane.f32.xlu0 %v1410
    %v1412 = vpop.xlane.xlu0 %1411
    %v1413 = vrcp.pop 256.0
    %v1414 = vmul.f32 256.0, %v1413
    %v1415 = vsub.f32 1.0, %v1414
    %v1416 = vmul.f32 %v1413, %v1415
    %v1417 = vadd.f32 %v1413, %v1416
    %vm1418 = vweird.f32 %v1413
    %v1419 = vsel %vm1418, %v1413, %v1417
    %v1420 = vmul.f32 %v1409, %v1419
    %v1421 = vmul.f32 %v1412, %v1419
    %v1422 = vmul.f32 %v1401, %v1401
    %v1423 = vmul.f32 %v1402, %v1402
    %v1424 = vmul.f32 %v1403, %v1403
    %v1425 = vmul.f32 %v1404, %v1404
    %v1426 = vadd.f32 %v1422, %v1423
    %1427 = vadd.xlane.f32.xlu0 %v1426
    %v1428 = vpop.xlane.xlu0 %1427
    %v1429 = vadd.f32 %v1424, %v1425
    %1430 = vadd.xlane.f32.xlu0 %v1429
    %v1431 = vpop.xlane.xlu0 %1430
    %v1432 = vmul.f32 %v1428, %v1419
    %v1433 = vmul.f32 %v1431, %v1419
    %v1434 = vmul.f32 %v1420, %v1420
    %v1435 = vmul.f32 %v1421, %v1421
    %v1436 = vsub.f32 %v1432, %v1434
    %v1437 = vsub.f32 %v1433, %v1435
    %v1438 = vmax.f32 %v1436, 0.0
    %v1439 = vmax.f32 %v1437, 0.0
    %v1440 = vsub.f32 %v1401, %v1420
    %v1441 = vsub.f32 %v1402, %v1420
    %v1442 = vsub.f32 %v1403, %v1421
    %v1443 = vsub.f32 %v1404, %v1421
    %v1444 = vadd.f32 %v1438, 1e-05
    %v1445 = vadd.f32 %v1439, 1e-05
    %v1446 = vrsqrt.pop %v1444
    %v1447 = vmul.f32 %v1446, %v1444
    %v1448 = vmul.f32 %v1447, %v1446
    %v1449 = vmul.f32 0.5, %v1448
    %v1450 = vsub.f32 1.5, %v1449
    %v1451 = vmul.f32 %v1446, %v1450
    %vm1452 = vweird.f32 %v1444
    %vm1453 = vweird.f32 %v1446
    %vm1454 = vmor %vm1452, %vm1453
    %v1455 = vsel %vm1454, %v1446, %v1451
    %v1456 = vrsqrt.pop %v1445
    %v1457 = vmul.f32 %v1456, %v1445
    %v1458 = vmul.f32 %v1457, %v1456
    %v1459 = vmul.f32 0.5, %v1458
    %v1460 = vsub.f32 1.5, %v1459
    %v1461 = vmul.f32 %v1456, %v1460
    %vm1462 = vweird.f32 %v1445
    %vm1463 = vweird.f32 %v1456
    %vm1464 = vmor %vm1462, %vm1463
    %v1465 = vsel %vm1464, %v1456, %v1461
    %v1466 = vmul.f32 %v1440, %v1455
    %v1467 = vmul.f32 %v1441, %v1455
    %v1468 = vmul.f32 %v1442, %v1465
    %v1469 = vmul.f32 %v1443, %v1465
    %v1471 = vperm.slane %v1405, 0
    %v1472 = vperm.slane %v1405, 1
    %v1475 = vmul.f32 %v1466, %v1471
    %v1476 = vmul.f32 %v1467, %v1472
    %v1477 = vmul.f32 %v1468, %v1471
    %v1478 = vmul.f32 %v1469, %v1472
    %v1480 = vperm.slane %v1406, 0
    %v1481 = vperm.slane %v1406, 1
    %v1484 = vadd.f32 %v1475, %v1480
    %v1485 = vadd.f32 %v1476, %v1481
    %v1486 = vadd.f32 %v1477, %v1480
    %v1487 = vadd.f32 %v1478, %v1481
    %v1488 = vmul.f32 %v1484, 0.2
    %v1489 = vmul.f32 %v1485, 0.2
    %v1490 = vmul.f32 %v1486, 0.2
    %v1491 = vmul.f32 %v1487, 0.2
    %v1492 = vmax.f32 %v1484, %v1488
    %v1493 = vmax.f32 %v1485, %v1489
    %v1494 = vmax.f32 %v1486, %v1490
    %v1495 = vmax.f32 %v1487, %v1491
    %v1496 = vpack.c.bf16 %v1494, %v1492
    %v1497 = vpack.c.bf16 %v1495, %v1493
    %v1498 = vld [vmem:[#allocation13] sm:$0xf]
    %v1499 = vld [vmem:[#allocation13 + $0x4] sm:$0xf]
    %v1500 = vld [vmem:[#allocation13 + $0x8] sm:$0xf]
    %v1501 = vld [vmem:[#allocation13 + $0xc] sm:$0xf]
    %v1502 = vld [vmem:[#allocation13 + $0x10] sm:$0xf]
    %v1503 = vld [vmem:[#allocation13 + $0x14] sm:$0xf]
    %v1504 = vld [vmem:[#allocation13 + $0x18] sm:$0xf]
    %v1505 = vld [vmem:[#allocation13 + $0x1c] sm:$0xf]
    %v1506 = vld [vmem:[#allocation13 + $0x20] sm:$0xf]
    %v1507 = vld [vmem:[#allocation13 + $0x24] sm:$0xf]
    %v1508 = vld [vmem:[#allocation13 + $0x28] sm:$0xf]
    %v1509 = vld [vmem:[#allocation13 + $0x2c] sm:$0xf]
    %v1510 = vld [vmem:[#allocation13 + $0x30] sm:$0xf]
    %v1511 = vld [vmem:[#allocation13 + $0x34] sm:$0xf]
    %v1512 = vld [vmem:[#allocation13 + $0x38] sm:$0xf]
    %v1513 = vld [vmem:[#allocation13 + $0x3c] sm:$0xf]
    %v1514 = vld [vmem:[#allocation13 + $0x40] sm:$0xf]
    %v1515 = vld [vmem:[#allocation13 + $0x44] sm:$0xf]
    %v1516 = vld [vmem:[#allocation13 + $0x48] sm:$0xf]
    %v1517 = vld [vmem:[#allocation13 + $0x4c] sm:$0xf]
    %v1518 = vld [vmem:[#allocation13 + $0x50] sm:$0xf]
    %v1519 = vld [vmem:[#allocation13 + $0x54] sm:$0xf]
    %v1520 = vld [vmem:[#allocation13 + $0x58] sm:$0xf]
    %v1521 = vld [vmem:[#allocation13 + $0x5c] sm:$0xf]
    %v1522 = vld [vmem:[#allocation13 + $0x60] sm:$0xf]
    %v1523 = vld [vmem:[#allocation13 + $0x64] sm:$0xf]
    %v1524 = vld [vmem:[#allocation13 + $0x68] sm:$0xf]
    %v1525 = vld [vmem:[#allocation13 + $0x6c] sm:$0xf]
    %v1526 = vld [vmem:[#allocation13 + $0x70] sm:$0xf]
    %v1527 = vld [vmem:[#allocation13 + $0x74] sm:$0xf]
    %v1528 = vld [vmem:[#allocation13 + $0x78] sm:$0xf]
    %v1529 = vld [vmem:[#allocation13 + $0x7c] sm:$0xf]
    %v1530 = vld [vmem:[%s10] sm:$0x1]
    %v1532 = vperm.slane %v1530, 0
    %v1566 = vunpack.c.l.b16 %v1498
    %v1567 = vunpack.c.l.b16 %v1499
    %v1568 = vunpack.c.l.b16 %v1500
    %v1569 = vunpack.c.l.b16 %v1501
    %v1570 = vunpack.c.l.b16 %v1502
    %v1571 = vunpack.c.l.b16 %v1503
    %v1572 = vunpack.c.l.b16 %v1504
    %v1573 = vunpack.c.l.b16 %v1505
    %v1574 = vunpack.c.l.b16 %v1506
    %v1575 = vunpack.c.l.b16 %v1507
    %v1576 = vunpack.c.l.b16 %v1508
    %v1577 = vunpack.c.l.b16 %v1509
    %v1578 = vunpack.c.l.b16 %v1510
    %v1579 = vunpack.c.l.b16 %v1511
    %v1580 = vunpack.c.l.b16 %v1512
    %v1581 = vunpack.c.l.b16 %v1513
    %v1582 = vunpack.c.l.b16 %v1514
    %v1583 = vunpack.c.l.b16 %v1515
    %v1584 = vunpack.c.l.b16 %v1516
    %v1585 = vunpack.c.l.b16 %v1517
    %v1586 = vunpack.c.l.b16 %v1518
    %v1587 = vunpack.c.l.b16 %v1519
    %v1588 = vunpack.c.l.b16 %v1520
    %v1589 = vunpack.c.l.b16 %v1521
    %v1590 = vunpack.c.l.b16 %v1522
    %v1591 = vunpack.c.l.b16 %v1523
    %v1592 = vunpack.c.l.b16 %v1524
    %v1593 = vunpack.c.l.b16 %v1525
    %v1594 = vunpack.c.l.b16 %v1526
    %v1595 = vunpack.c.l.b16 %v1527
    %v1596 = vunpack.c.l.b16 %v1528
    %v1597 = vunpack.c.l.b16 %v1529
    %v1598 = vpack.c.b16 %v1567, %v1566
    %v1599 = vpack.c.b16 %v1569, %v1568
    %v1600 = vpack.c.b16 %v1571, %v1570
    %v1601 = vpack.c.b16 %v1573, %v1572
    %v1602 = vpack.c.b16 %v1575, %v1574
    %v1603 = vpack.c.b16 %v1577, %v1576
    %v1604 = vpack.c.b16 %v1579, %v1578
    %v1605 = vpack.c.b16 %v1581, %v1580
    %v1606 = vpack.c.b16 %v1583, %v1582
    %v1607 = vpack.c.b16 %v1585, %v1584
    %v1608 = vpack.c.b16 %v1587, %v1586
    %v1609 = vpack.c.b16 %v1589, %v1588
    %v1610 = vpack.c.b16 %v1591, %v1590
    %v1611 = vpack.c.b16 %v1593, %v1592
    %v1612 = vpack.c.b16 %v1595, %v1594
    %v1613 = vpack.c.b16 %v1597, %v1596
    %1630 = vmatpush.bf16.msra.mxu0 %v1605
    %1631 = vmatpush.bf16.msra.mxu0 %v1604
    %1632 = vmatpush.bf16.msra.mxu0 %v1603
    %1633 = vmatpush.bf16.msra.mxu0 %v1602
    %1634 = vmatpush.bf16.msra.mxu0 %v1601
    %1635 = vmatpush.bf16.msra.mxu0 %v1600
    %1636 = vmatpush.bf16.msra.mxu0 %v1599
    %1637 = vmatpush.bf16.msra.mxu0 %v1598
    %1638 = vmatmul.bf16.gmra.mxu0 %v1496
    %v1639 = vpop.f32.mrf.mxu0
    %v1640 = vadd.f32 %v1532, %v1639
    %v1641 = vpop.f32.mrf.mxu0
    %v1642 = vadd.f32 %v1532, %v1641
    %1643 = vdwg.mxu0
    %1644 = vmatpush.bf16.msra.mxu0 %v1613
    %1645 = vmatpush.bf16.msra.mxu0 %v1612
    %1646 = vmatpush.bf16.msra.mxu0 %v1611
    %1647 = vmatpush.bf16.msra.mxu0 %v1610
    %1648 = vmatpush.bf16.msra.mxu0 %v1609
    %1649 = vmatpush.bf16.msra.mxu0 %v1608
    %1650 = vmatpush.bf16.msra.mxu0 %v1607
    %1651 = vmatpush.bf16.msra.mxu0 %v1606
    %1652 = vmatmul.bf16.gmra.mxu0 %v1497
    %v1653 = vpop.f32.mrf.mxu0
    %v1654 = vadd.f32 %v1640, %v1653
    %v1655 = vpop.f32.mrf.mxu0
    %v1656 = vadd.f32 %v1642, %v1655
    %1657 = vdwg.mxu0
    %1658 = vst [vmem:[#allocation14] sm:$0xff] %v1654
    %1659 = vst [vmem:[#allocation14 + $0x8] sm:$0xff] %v1656
    // Predicated region
    $region74: #{tpu_custom_call.1} parent=1 // pred_check
      _
    $region75: #{tpu_custom_call.1} parent=1 // pred_check_branch
      %1661 = sbr.rel (0) target = $region77
    $region76: #{tpu_custom_call.1} parent=1 // pred_region
      %1663 = vsyncadd [#allocation4], 0
      %s1664 = sshll.u32 [#allocation14], 4
      %s1665 = int_to_ptr.vmem [resolvable:$true] %s1664
      %s1666 = sshll.u32 %s11, 4
      %s1667 = int_to_ptr.hbm [resolvable:$true] %s1666
      %1672 = dma.vmem_to_hbm [thread:$0]  %s1665, 256, %s1667, [#allocation4], 128, 128, 8
    $region77: #{tpu_custom_call.1} parent=1 // pred_fallthru
      _
    // Predicated region
    $region78: #{tpu_custom_call.1} parent=1 // pred_check
      _
    $region79: #{tpu_custom_call.1} parent=1 // pred_check_branch
      %1674 = sbr.rel (0) target = $region81
    $region80: #{tpu_custom_call.1} parent=1 // pred_region
      %1676 = dma.done [#allocation4], 256
    $region81: #{tpu_custom_call.1} parent=1 // pred_fallthru
      _
    %1677 = vsyncpa [#allocation3], 1
    %1678 = vsyncpa [#allocation6], 1
    %1679 = vsyncpa [#allocation9], 1
    %1680 = vsyncpa [#allocation12], 1
    %1681 = vsyncpa [#allocation4], 1

</llo_original>
